<compile_context>
chip_gen: v5e
topology: v5e:2x2
jax: 0.10.0
libtpu: 0.0.40
codegen_flags: <defaults>
</compile_context>

<pallas_src>
import functools

import jax
import jax.numpy as jnp
from jax import lax
from jax.experimental import pallas as pl
from jax.experimental.pallas import tpu as pltpu


def _trellis_kernel(x_ref, h0_ref, c0_ref, w1_ref, w2_ref, b2_ref, wl_ref, bl_ref,
                    logp_ref, hid_ref, cell_ref, ht_s, ct_s,
                    *, nlevels, ksize, seq_len, pad_rows):
    L = seq_len
    PAD = pad_rows
    B_blk, hs = h0_ref.shape
    M = B_blk * L
    h4 = 4 * hs

    # -------- hoisted, level-invariant values --------
    h0 = h0_ref[...]                                      # (B_blk, hs) f32
    c0 = c0_ref[...]                                      # (B_blk, hs) f32
    h0_bf = h0.astype(jnp.bfloat16)
    w2_taps = [w2_ref[j] for j in range(ksize)]           # ksize x (hs, 4*hs) bf16

    # Full-width gate activation: sigmoid(x) = 0.5*tanh(x/2)+0.5, tanh(x) for the
    # g-gate lanes -> a single EUP tanh pass over (M, 4*hs) per level.
    lane = lax.broadcasted_iota(jnp.int32, (1, h4), 1)
    is_g = jnp.logical_and(lane >= 2 * hs, lane < 3 * hs)
    gscale = jnp.where(is_g, 1.0, 0.5).astype(jnp.float32)      # (1, 4*hs)
    gshift = jnp.where(is_g, 0.0, 0.5).astype(jnp.float32)

    # Input injection (cached across levels): one fused matmul over all ksize x-taps
    # (taps pre-stacked along channels in the wrapper); conv bias folded in once.
    # Stored bf16 to halve its VMEM residency across the level loop.
    injected = (jnp.dot(x_ref[...], w1_ref[...], preferred_element_type=jnp.float32)
                + b2_ref[...]).astype(jnp.bfloat16)              # (M, 4*hs)

    # Seed the per-sequence causal pad rows of the state scratch with h0 / c0.
    # A time-shift by s is then a static window read ht_s[:, PAD-s:PAD-s+L, :]
    # (the pad rows supply h0/c0 for the first s steps of every sequence).
    ht_s[:, 0:PAD, :] = jnp.broadcast_to(h0_bf[:, None, :], (B_blk, PAD, hs))
    ct_s[:, 0:PAD, :] = jnp.broadcast_to(c0[:, None, :], (B_blk, PAD, hs))

    def gates(pre):
        act = jnp.tanh(pre * gscale) * gscale + gshift           # (M, 4*hs) f32
        # NOTE: with hs a multiple of 128 these slices are lane-aligned (free).
        return (act[:, 0:hs], act[:, hs:2 * hs],
                act[:, 2 * hs:3 * hs], act[:, 3 * hs:4 * hs])

    def write_state(ht_new, ct_new):
        ht_s[:, PAD:PAD + L, :] = ht_new.astype(jnp.bfloat16).reshape(B_blk, L, hs)
        ct_s[:, PAD:PAD + L, :] = ct_new.reshape(B_blk, L, hs)

    # -------- peeled level 0: states start at zero, so the hidden-conv matmul
    # reduces to the h0 boundary rows (first ksize-1 steps of each sequence). --------
    t_local = lax.broadcasted_iota(jnp.int32, (M, 1), 0) % L
    pre0 = injected.astype(jnp.float32)
    for j in range(ksize - 1):                                   # taps with shift s >= 1
        s = ksize - 1 - j
        contrib = jnp.dot(h0_bf, w2_taps[j],
                          preferred_element_type=jnp.float32)    # (B_blk, 4*hs)
        contrib = jnp.broadcast_to(contrib[:, None, :],
                                   (B_blk, L, h4)).reshape(M, h4)
        pre0 = pre0 + jnp.where(t_local < s, contrib, 0.0)
    it, ot, gt, ft = gates(pre0)
    c0_rows = jnp.broadcast_to(c0[:, None, :], (B_blk, L, hs)).reshape(M, hs)
    ct_prev0 = jnp.where(t_local < 1, c0_rows, 0.0)              # [c0, 0, 0, ...] / seq
    ct_new = ft * ct_prev0 + it * gt
    ht_new = ot * jnp.tanh(ct_new)
    write_state(ht_new, ct_new)

    # -------- levels 1 .. nlevels-1 (shared weights) --------
    def level(_, carry):
        pre = None
        for j in range(ksize):
            s = ksize - 1 - j
            tap = ht_s[:, PAD - s:PAD - s + L, :].reshape(M, hs)  # bf16 window read
            mm = jnp.dot(tap, w2_taps[j], preferred_element_type=jnp.float32)
            pre = mm if pre is None else pre + mm
        pre = pre + injected                                      # bf16 -> f32 promote
        it, ot, gt, ft = gates(pre)
        ct_prev = ct_s[:, PAD - 1:PAD - 1 + L, :].reshape(M, hs)  # f32
        ct_new = ft * ct_prev + it * gt
        ht_new = ot * jnp.tanh(ct_new)
        write_state(ht_new, ct_new)
        return carry

    if nlevels > 1:
        n_rem = nlevels - 1
        lax.fori_loop(1, nlevels, level, 0,
                      unroll=(n_rem if n_rem <= 8 else 4))

    # -------- outputs: last time step of every sequence in the tile --------
    ht_last = ht_s[:, PAD + L - 1, :].astype(jnp.float32)         # (B_blk, hs)
    ct_last = ct_s[:, PAD + L - 1, :]
    hid_ref[...] = ht_last
    cell_ref[...] = ct_last

    nout = wl_ref.shape[1]
    logits = jnp.dot(ht_last[:, hs - nout:], wl_ref[...],
                     preferred_element_type=jnp.float32) + bl_ref[...]
    m = jnp.max(logits, axis=1, keepdims=True)
    zc = logits - m
    logp_ref[...] = zc - jnp.log(jnp.sum(jnp.exp(zc), axis=1, keepdims=True))


def _estimate_tile_vmem(b_blk, L, hs, ksize, ninp, pad):
    """Rough per-grid-step VMEM footprint (scratch + residents + f32 temporaries)."""
    M = b_blk * L
    h4 = 4 * hs
    by = b_blk * (pad + L) * hs * (2 + 4)       # ht (bf16) + ct (f32) scratch
    by += M * h4 * 2                            # injected (bf16), loop-invariant
    by += 3 * M * h4 * 4                        # pre / act / gate f32 temporaries
    by += 2 * M * hs * 4                        # cell-shift read + ht_new temporaries
    by += 2 * M * ksize * ninp * 2              # double-buffered x input block (bf16)
    by += 2 * ksize * hs * h4 * 2               # W2 taps resident (bf16)
    return by


def _pick_batch_block(B, L, hs, ksize, ninp, pad, vmem_budget):
    """Largest divisor of B whose tile fits the VMEM budget; prefers >= 2 grid steps
    so the 'parallel' batch axis can shard across v7x's two TensorCores."""
    divisors = [d for d in range(1, B + 1) if B % d == 0]
    fitting = [d for d in divisors
               if _estimate_tile_vmem(d, L, hs, ksize, ninp, pad) <= vmem_budget]
    if not fitting:
        return 1
    multi = [d for d in fitting if B // d >= 2]
    return max(multi) if multi else max(fitting)


def trellisnet_forward(x_ncl, hidden, params, *, nlevels, ksize):
    """x_ncl: (B, ninp, L) as in the PyTorch module; hidden: (h0, c0), each (B, h_size, 1)."""
    w1_t, w2_t, b2, wl, bl = (params[k] for k in ("weight1", "weight2", "bias2",
                                                  "lin_w", "lin_b"))
    B, ninp, L = x_ncl.shape
    h4, hs = w2_t.shape[0], w2_t.shape[1]
    nout = wl.shape[0]
    assert L % 8 == 0, "sequence length must be a multiple of 8 (sublane tiling)"
    assert h4 == 4 * hs

    # Leading pad rows of the state scratch (>= ksize-1 and >= 1 for the cell shift),
    # rounded to a sublane multiple so the live-row stores stay aligned.
    PAD = ((max(ksize - 1, 1) + 7) // 8) * 8

    # VMEM-aware budgeting: ~48 MiB on v7x (64 MiB VMEM), ~96 MiB on v5e/v6e (128 MiB).
    try:
        vmem_cap = int(pltpu.get_tpu_info().vmem_capacity_bytes)
    except Exception:
        vmem_cap = 64 * 1024 * 1024                       # v7x-safe fallback
    vmem_limit = max(32 * 1024 * 1024,
                     min(vmem_cap * 3 // 4, 112 * 1024 * 1024))
    B_blk = _pick_batch_block(B, L, hs, ksize, ninp, PAD, int(vmem_limit * 0.8))
    G = B // B_blk
    M = B_blk * L

    # ---- wrapper-side layout plumbing: lane-dense, grid-tiled operands ----
    x_blc = jnp.transpose(x_ncl, (0, 2, 1)).astype(jnp.float32)        # (B, L, ninp)
    taps = []
    for j in range(ksize):
        s = ksize - 1 - j
        xs = x_blc if s == 0 else jnp.pad(x_blc, ((0, 0), (s, 0), (0, 0)))[:, :L, :]
        taps.append(xs)
    x_taps = jnp.concatenate(taps, axis=-1).astype(jnp.bfloat16)       # (B, L, k*ninp)
    x_g = x_taps.reshape(G, M, ksize * ninp)

    h0_g = hidden[0][:, :, 0].astype(jnp.float32).reshape(G, B_blk, hs)
    c0_g = hidden[1][:, :, 0].astype(jnp.float32).reshape(G, B_blk, hs)

    w1_s = jnp.transpose(w1_t, (2, 1, 0)).reshape(ksize * ninp, h4).astype(jnp.bfloat16)
    w2_s = jnp.transpose(w2_t, (2, 1, 0)).astype(jnp.bfloat16)         # (ksize, hs, 4hs)
    b2_r = b2.reshape(1, h4).astype(jnp.float32)
    wl_T = jnp.transpose(wl).astype(jnp.float32)                       # (nout, nout)
    bl_r = bl.reshape(1, nout).astype(jnp.float32)

    kernel = functools.partial(_trellis_kernel, nlevels=nlevels, ksize=ksize,
                               seq_len=L, pad_rows=PAD)

    out_shape = (
        jax.ShapeDtypeStruct((G, B_blk, nout), jnp.float32),   # log-probs
        jax.ShapeDtypeStruct((G, B_blk, hs), jnp.float32),     # new hidden (h_T)
        jax.ShapeDtypeStruct((G, B_blk, hs), jnp.float32),     # new cell (c_T)
    )
    in_specs = [
        pl.BlockSpec((None, M, ksize * ninp), lambda g: (g, 0, 0)),
        pl.BlockSpec((None, B_blk, hs), lambda g: (g, 0, 0)),
        pl.BlockSpec((None, B_blk, hs), lambda g: (g, 0, 0)),
        pl.BlockSpec((ksize * ninp, h4), lambda g: (0, 0)),
        pl.BlockSpec((ksize, hs, h4), lambda g: (0, 0, 0)),
        pl.BlockSpec((1, h4), lambda g: (0, 0)),
        pl.BlockSpec((nout, nout), lambda g: (0, 0)),
        pl.BlockSpec((1, nout), lambda g: (0, 0)),
    ]
    out_specs = (
        pl.BlockSpec((None, B_blk, nout), lambda g: (g, 0, 0)),
        pl.BlockSpec((None, B_blk, hs), lambda g: (g, 0, 0)),
        pl.BlockSpec((None, B_blk, hs), lambda g: (g, 0, 0)),
    )

    logp, hid, cell = pl.pallas_call(
        kernel,
        grid=(G,),
        in_specs=in_specs,
        out_specs=out_specs,
        out_shape=out_shape,
        scratch_shapes=[pltpu.VMEM((B_blk, PAD + L, hs), jnp.bfloat16),   # ht state
                        pltpu.VMEM((B_blk, PAD + L, hs), jnp.float32)],   # ct state
        compiler_params=pltpu.CompilerParams(
            dimension_semantics=("parallel",),
            vmem_limit_bytes=int(vmem_limit)),
    )(x_g, h0_g, c0_g, w1_s, w2_s, b2_r, wl_T, bl_r)

    logp = logp.reshape(B, nout)
    new_hidden = (hid.reshape(B, hs)[:, :, None], cell.reshape(B, hs)[:, :, None])
    return logp, new_hidden


def reference_forward(x_ncl, hidden, params, *, nlevels, ksize):
    """Pure-JAX reference mirroring the PyTorch code (NCL layout, lax conv1d)."""
    w1, w2, b2, wl, bl = (params[k] for k in ("weight1", "weight2", "bias2",
                                              "lin_w", "lin_b"))
    B, ninp, L = x_ncl.shape
    hs = w2.shape[1]
    nout = wl.shape[0]
    h0, c0 = hidden
    pad = ksize - 1
    dn = ("NCH", "OIH", "NCH")

    xpad = jnp.pad(x_ncl, ((0, 0), (0, 0), (pad, 0)))
    injected = lax.conv_general_dilated(xpad, w1, (1,), "VALID", dimension_numbers=dn)

    ht = jnp.zeros((B, hs, L), jnp.float32)
    ct = jnp.zeros((B, hs, L), jnp.float32)
    for _ in range(nlevels):
        z = jnp.concatenate([jnp.repeat(h0, pad, axis=2), ht], axis=2)
        conv_h = lax.conv_general_dilated(z, w2, (1,), "VALID",
                                          dimension_numbers=dn) + b2[None, :, None]
        out = injected + conv_h
        ct_1 = jnp.concatenate([c0, ct[:, :, :L - 1]], axis=2)
        it = jax.nn.sigmoid(out[:, :hs])
        ot = jax.nn.sigmoid(out[:, hs:2 * hs])
        gt = jnp.tanh(out[:, 2 * hs:3 * hs])
        ft = jax.nn.sigmoid(out[:, 3 * hs:4 * hs])
        ct = ft * ct_1 + it * gt
        ht = ot * jnp.tanh(ct)

    raw_last = ht[:, hs - nout:, L - 1]
    logits = raw_last @ wl.T + bl
    logp = jax.nn.log_softmax(logits, axis=1)
    return logp, (ht[:, :, L - 1:], ct[:, :, L - 1:])


if __name__ == "__main__":
    # Small shapes consistent with the module: B=2, ninp=3 channels, L=16 pixel stream,
    # nhid=16, nout=16 => h_size=32, 4*h_size=128; nlevels=4, kernel_size=2, dilation=1.
    B, ninp, L = 2, 3, 16
    nhid, nout = 16, 16
    nlevels, ksize = 4, 2
    hs = nhid + nout
    h4 = 4 * hs

    key = jax.random.PRNGKey(0)
    k1, k2, k3, k4, k5, k6 = jax.random.split(key, 6)
    # WeightShareConv1d.init_weights: N(0, 0.01); wnorm folded (effective weight == v).
    params = {
        "weight1": 0.01 * jax.random.normal(k1, (h4, ninp, ksize), jnp.float32),
        "weight2": 0.01 * jax.random.normal(k2, (h4, hs, ksize), jnp.float32),
        "bias2": 0.01 * jax.random.normal(k3, (h4,), jnp.float32),
        "lin_w": (1.0 / jnp.sqrt(nout)) * jax.random.normal(k4, (nout, nout), jnp.float32),
        "lin_b": jnp.zeros((nout,), jnp.float32),
    }
    x = jax.random.normal(k5, (B, ninp, L), jnp.float32)

    def check(hid_pair):
        logp, (h_new, c_new) = trellisnet_forward(x, hid_pair, params,
                                                  nlevels=nlevels, ksize=ksize)
        jax.block_until_ready(logp)
        ref_logp, (ref_h, ref_c) = reference_forward(x, hid_pair, params,
                                                     nlevels=nlevels, ksize=ksize)
        assert logp.shape == (B, nout)
        assert h_new.shape == (B, hs, 1) and c_new.shape == (B, hs, 1)
        assert bool(jnp.allclose(logp, ref_logp, atol=1e-3, rtol=1e-3)), "log-softmax mismatch"
        assert bool(jnp.allclose(h_new, ref_h, atol=1e-3, rtol=1e-3)), "hidden mismatch"
        assert bool(jnp.allclose(c_new, ref_c, atol=1e-3, rtol=1e-3)), "cell mismatch"

    # init_hidden(bsz): zeros (B, nhid+nout, 1); also exercise a non-zero carried state
    # to validate the seeded h0/c0 pad-row path.
    zero_hidden = (jnp.zeros((B, hs, 1), jnp.float32), jnp.zeros((B, hs, 1), jnp.float32))
    rand_hidden = (0.1 * jax.random.normal(k6, (B, hs, 1), jnp.float32),
                   0.1 * jax.random.normal(jax.random.fold_in(k6, 7), (B, hs, 1), jnp.float32))
    check(zero_hidden)
    check(rand_hidden)

    print("KERNEL_OK")
</pallas_src>

<mosaic_0001>
module attributes {stable_mosaic.version = 11 : i64} {
  func.func @_trellis_kernel(%arg0: i32, %arg1: memref<1x16x6xbf16, #tpu.memory_space<vmem>>, %arg2: memref<1x1x32xf32, #tpu.memory_space<vmem>>, %arg3: memref<1x1x32xf32, #tpu.memory_space<vmem>>, %arg4: memref<6x128xbf16, #tpu.memory_space<vmem>>, %arg5: memref<2x32x128xbf16, #tpu.memory_space<vmem>>, %arg6: memref<1x128xf32, #tpu.memory_space<vmem>>, %arg7: memref<16x16xf32, #tpu.memory_space<vmem>>, %arg8: memref<1x16xf32, #tpu.memory_space<vmem>>, %arg9: memref<1x1x16xf32, #tpu.memory_space<vmem>>, %arg10: memref<1x1x32xf32, #tpu.memory_space<vmem>>, %arg11: memref<1x1x32xf32, #tpu.memory_space<vmem>>, %arg12: memref<1x24x32xbf16, #tpu.memory_space<vmem>>, %arg13: memref<1x24x32xf32, #tpu.memory_space<vmem>>) attributes {dimension_semantics = [#tpu.dimension_semantics<parallel>], iteration_bounds = array<i64: 2>, scalar_prefetch = 0 : i64, scratch_operands = 2 : i64, tpu.core_type = #tpu.core_type<tc>, window_params = [{transform_indices = @transform_0, window_bounds = array<i64: 1, 16, 6>}, {transform_indices = @transform_1, window_bounds = array<i64: 1, 1, 32>}, {transform_indices = @transform_2, window_bounds = array<i64: 1, 1, 32>}, {pipeline_mode = #tpu.pipeline_mode<synchronous>, transform_indices = @transform_3, window_bounds = array<i64: 6, 128>}, {pipeline_mode = #tpu.pipeline_mode<synchronous>, transform_indices = @transform_4, window_bounds = array<i64: 2, 32, 128>}, {pipeline_mode = #tpu.pipeline_mode<synchronous>, transform_indices = @transform_5, window_bounds = array<i64: 1, 128>}, {pipeline_mode = #tpu.pipeline_mode<synchronous>, transform_indices = @transform_6, window_bounds = array<i64: 16, 16>}, {pipeline_mode = #tpu.pipeline_mode<synchronous>, transform_indices = @transform_7, window_bounds = array<i64: 1, 16>}, {transform_indices = @transform_8, window_bounds = array<i64: 1, 1, 16>}, {transform_indices = @transform_9, window_bounds = array<i64: 1, 1, 32>}, {transform_indices = @transform_10, window_bounds = array<i64: 1, 1, 32>}]} {
    %c0 = arith.constant 0 : index
    %c0_0 = arith.constant 0 : index
    %c0_1 = arith.constant 0 : index
    %0 = vector.load %arg2[%c0, %c0_0, %c0_1] : memref<1x1x32xf32, #tpu.memory_space<vmem>>, vector<1x1x32xf32>
    %1 = vector.shape_cast %0 : vector<1x1x32xf32> to vector<1x32xf32>
    %c0_2 = arith.constant 0 : index
    %c0_3 = arith.constant 0 : index
    %c0_4 = arith.constant 0 : index
    %2 = vector.load %arg3[%c0_2, %c0_3, %c0_4] : memref<1x1x32xf32, #tpu.memory_space<vmem>>, vector<1x1x32xf32>
    %3 = vector.shape_cast %2 : vector<1x1x32xf32> to vector<1x32xf32>
    %4 = arith.truncf %1 : vector<1x32xf32> to vector<1x32xbf16>
    %c0_5 = arith.constant 0 : index
    %c0_6 = arith.constant 0 : index
    %c0_7 = arith.constant 0 : index
    %5 = vector.load %arg5[%c0_5, %c0_6, %c0_7] : memref<2x32x128xbf16, #tpu.memory_space<vmem>>, vector<1x32x128xbf16>
    %6 = vector.shape_cast %5 : vector<1x32x128xbf16> to vector<32x128xbf16>
    %c1 = arith.constant 1 : index
    %c0_8 = arith.constant 0 : index
    %c0_9 = arith.constant 0 : index
    %7 = vector.load %arg5[%c1, %c0_8, %c0_9] : memref<2x32x128xbf16, #tpu.memory_space<vmem>>, vector<1x32x128xbf16>
    %8 = vector.shape_cast %7 : vector<1x32x128xbf16> to vector<32x128xbf16>
    %9 = tpu.iota {dimensions = array<i32: 1>} : vector<1x128xi32>
    %c64_i32 = arith.constant 64 : i32
    %10 = vector.broadcast %c64_i32 : i32 to vector<1x128xi32>
    %11 = arith.cmpi sge, %9, %10 : vector<1x128xi32>
    %c96_i32 = arith.constant 96 : i32
    %12 = vector.broadcast %c96_i32 : i32 to vector<1x128xi32>
    %13 = arith.cmpi slt, %9, %12 : vector<1x128xi32>
    %14 = arith.andi %11, %13 : vector<1x128xi1>
    %cst = arith.constant 1.000000e+00 : f32
    %cst_10 = arith.constant 5.000000e-01 : f32
    %15 = vector.broadcast %cst : f32 to vector<1x128xf32>
    %16 = vector.broadcast %cst_10 : f32 to vector<1x128xf32>
    %17 = arith.select %14, %15, %16 : vector<1x128xi1>, vector<1x128xf32>
    %cst_11 = arith.constant 0.000000e+00 : f32
    %cst_12 = arith.constant 5.000000e-01 : f32
    %18 = vector.broadcast %cst_11 : f32 to vector<1x128xf32>
    %19 = vector.broadcast %cst_12 : f32 to vector<1x128xf32>
    %20 = arith.select %14, %18, %19 : vector<1x128xi1>, vector<1x128xf32>
    %c0_13 = arith.constant 0 : index
    %c0_14 = arith.constant 0 : index
    %c0_15 = arith.constant 0 : index
    %21 = vector.load %arg1[%c0_13, %c0_14, %c0_15] : memref<1x16x6xbf16, #tpu.memory_space<vmem>>, vector<1x16x6xbf16>
    %22 = vector.shape_cast %21 : vector<1x16x6xbf16> to vector<16x6xbf16>
    %c0_16 = arith.constant 0 : index
    %c0_17 = arith.constant 0 : index
    %23 = vector.load %arg4[%c0_16, %c0_17] : memref<6x128xbf16, #tpu.memory_space<vmem>>, vector<6x128xbf16>
    %cst_18 = arith.constant dense<0.000000e+00> : vector<16x128xf32>
    %24 = tpu.matmul %22, %23, %cst_18 {dimension_numbers = #tpu.dot_dimension_numbers<[1], [0], [0], [1], [0, 0, 1, 1], [], []>} : vector<16x6xbf16>, vector<6x128xbf16>, vector<16x128xf32> -> vector<16x128xf32>
    %c0_19 = arith.constant 0 : index
    %c0_20 = arith.constant 0 : index
    %25 = vector.load %arg6[%c0_19, %c0_20] : memref<1x128xf32, #tpu.memory_space<vmem>>, vector<1x128xf32>
    %26 = vector.broadcast %25 : vector<1x128xf32> to vector<16x128xf32>
    %27 = arith.addf %24, %26 : vector<16x128xf32>
    %28 = arith.truncf %27 : vector<16x128xf32> to vector<16x128xbf16>
    %29 = vector.shape_cast %4 : vector<1x32xbf16> to vector<1x1x32xbf16>
    %30 = vector.shape_cast %29 : vector<1x1x32xbf16> to vector<1x1x32xbf16>
    %31 = vector.broadcast %30 : vector<1x1x32xbf16> to vector<1x8x32xbf16>
    %c0_21 = arith.constant 0 : index
    %c0_22 = arith.constant 0 : index
    %c0_23 = arith.constant 0 : index
    %32 = vector.load %arg12[%c0_21, %c0_22, %c0_23] : memref<1x24x32xbf16, #tpu.memory_space<vmem>>, vector<1x8x32xbf16>
    tpu.vector_store %arg12[%c0_21, %c0_22, %c0_23], %31 {strides = array<i32>} : memref<1x24x32xbf16, #tpu.memory_space<vmem>>, vector<1x8x32xbf16>,
    %33 = vector.shape_cast %3 : vector<1x32xf32> to vector<1x1x32xf32>
    %34 = vector.shape_cast %33 : vector<1x1x32xf32> to vector<1x1x32xf32>
    %35 = vector.broadcast %34 : vector<1x1x32xf32> to vector<1x8x32xf32>
    %c0_24 = arith.constant 0 : index
    %c0_25 = arith.constant 0 : index
    %c0_26 = arith.constant 0 : index
    %36 = vector.load %arg13[%c0_24, %c0_25, %c0_26] : memref<1x24x32xf32, #tpu.memory_space<vmem>>, vector<1x8x32xf32>
    tpu.vector_store %arg13[%c0_24, %c0_25, %c0_26], %35 {strides = array<i32>} : memref<1x24x32xf32, #tpu.memory_space<vmem>>, vector<1x8x32xf32>,
    %37 = tpu.iota {dimensions = array<i32: 0>} : vector<16x1xi32>
    %c16_i32 = arith.constant 16 : i32
    %c0_i32 = arith.constant 0 : i32
    %38 = arith.cmpi eq, %c16_i32, %c0_i32 : i32
    %c1_i32 = arith.constant 1 : i32
    %39 = arith.select %38, %c1_i32, %c16_i32 : i32
    %40 = vector.broadcast %39 : i32 to vector<16x1xi32>
    %41 = arith.remsi %37, %40 : vector<16x1xi32>
    %c0_i32_27 = arith.constant 0 : i32
    %42 = vector.broadcast %c0_i32_27 : i32 to vector<16x1xi32>
    %43 = arith.cmpi ne, %41, %42 : vector<16x1xi32>
    %c0_i32_28 = arith.constant 0 : i32
    %44 = vector.broadcast %c0_i32_28 : i32 to vector<16x1xi32>
    %45 = arith.cmpi slt, %41, %44 : vector<16x1xi32>
    %c0_i32_29 = arith.constant 0 : i32
    %46 = arith.cmpi slt, %39, %c0_i32_29 : i32
    %47 = vector.broadcast %46 : i1 to vector<16x1xi1>
    %48 = vector.broadcast %47 : vector<16x1xi1> to vector<16x1xi1>
    %49 = arith.xori %45, %48 : vector<16x1xi1>
    %50 = arith.andi %49, %43 : vector<16x1xi1>
    %51 = vector.broadcast %39 : i32 to vector<16x1xi32>
    %52 = arith.addi %41, %51 : vector<16x1xi32>
    %53 = arith.select %50, %52, %41 : vector<16x1xi1>, vector<16x1xi32>
    %54 = arith.extf %28 : vector<16x128xbf16> to vector<16x128xf32>
    %cst_30 = arith.constant dense<0.000000e+00> : vector<1x128xf32>
    %55 = tpu.matmul %4, %6, %cst_30 {dimension_numbers = #tpu.dot_dimension_numbers<[1], [0], [0], [1], [0, 0, 1, 1], [], []>} : vector<1x32xbf16>, vector<32x128xbf16>, vector<1x128xf32> -> vector<1x128xf32>
    %56 = vector.shape_cast %55 : vector<1x128xf32> to vector<1x1x128xf32>
    %57 = vector.shape_cast %56 : vector<1x1x128xf32> to vector<1x1x128xf32>
    %58 = vector.broadcast %57 : vector<1x1x128xf32> to vector<1x16x128xf32>
    %59 = vector.shape_cast %58 : vector<1x16x128xf32> to vector<16x128xf32>
    %c1_i32_31 = arith.constant 1 : i32
    %60 = vector.broadcast %c1_i32_31 : i32 to vector<16x1xi32>
    %61 = arith.cmpi slt, %53, %60 : vector<16x1xi32>
    %cst_32 = arith.constant 0.000000e+00 : f32
    %62 = vector.shape_cast %61 : vector<16x1xi1> to vector<16x1xi1>
    %63 = vector.broadcast %62 : vector<16x1xi1> to vector<16x128xi1>
    %64 = vector.broadcast %cst_32 : f32 to vector<16x128xf32>
    %65 = arith.select %63, %59, %64 : vector<16x128xi1>, vector<16x128xf32>
    %66 = arith.addf %54, %65 : vector<16x128xf32>
    %67 = vector.broadcast %17 : vector<1x128xf32> to vector<16x128xf32>
    %68 = arith.mulf %66, %67 : vector<16x128xf32>
    %69 = math.tanh %68 : vector<16x128xf32>
    %70 = vector.broadcast %17 : vector<1x128xf32> to vector<16x128xf32>
    %71 = arith.mulf %69, %70 : vector<16x128xf32>
    %72 = vector.broadcast %20 : vector<1x128xf32> to vector<16x128xf32>
    %73 = arith.addf %71, %72 : vector<16x128xf32>
    %74 = vector.extract_strided_slice %73 {offsets = [0, 0], sizes = [16, 32], strides = [1, 1]} : vector<16x128xf32> to vector<16x32xf32>
    %75 = vector.extract_strided_slice %73 {offsets = [0, 32], sizes = [16, 32], strides = [1, 1]} : vector<16x128xf32> to vector<16x32xf32>
    %76 = vector.extract_strided_slice %73 {offsets = [0, 64], sizes = [16, 32], strides = [1, 1]} : vector<16x128xf32> to vector<16x32xf32>
    %77 = vector.extract_strided_slice %73 {offsets = [0, 96], sizes = [16, 32], strides = [1, 1]} : vector<16x128xf32> to vector<16x32xf32>
    %78 = vector.shape_cast %3 : vector<1x32xf32> to vector<1x1x32xf32>
    %79 = vector.shape_cast %78 : vector<1x1x32xf32> to vector<1x1x32xf32>
    %80 = vector.broadcast %79 : vector<1x1x32xf32> to vector<1x16x32xf32>
    %81 = vector.shape_cast %80 : vector<1x16x32xf32> to vector<16x32xf32>
    %c1_i32_33 = arith.constant 1 : i32
    %82 = vector.broadcast %c1_i32_33 : i32 to vector<16x1xi32>
    %83 = arith.cmpi slt, %53, %82 : vector<16x1xi32>
    %cst_34 = arith.constant 0.000000e+00 : f32
    %84 = vector.shape_cast %83 : vector<16x1xi1> to vector<16x1xi1>
    %85 = vector.broadcast %84 : vector<16x1xi1> to vector<16x32xi1>
    %86 = vector.broadcast %cst_34 : f32 to vector<16x32xf32>
    %87 = arith.select %85, %81, %86 : vector<16x32xi1>, vector<16x32xf32>
    %88 = arith.mulf %77, %87 : vector<16x32xf32>
    %89 = arith.mulf %74, %76 : vector<16x32xf32>
    %90 = arith.addf %88, %89 : vector<16x32xf32>
    %91 = math.tanh %90 : vector<16x32xf32>
    %92 = arith.mulf %75, %91 : vector<16x32xf32>
    %93 = arith.truncf %92 : vector<16x32xf32> to vector<16x32xbf16>
    %94 = vector.shape_cast %93 : vector<16x32xbf16> to vector<1x16x32xbf16>
    %c0_35 = arith.constant 0 : index
    %c8 = arith.constant 8 : index
    %c0_36 = arith.constant 0 : index
    %95 = vector.load %arg12[%c0_35, %c8, %c0_36] : memref<1x24x32xbf16, #tpu.memory_space<vmem>>, vector<1x16x32xbf16>
    tpu.vector_store %arg12[%c0_35, %c8, %c0_36], %94 {strides = array<i32>} : memref<1x24x32xbf16, #tpu.memory_space<vmem>>, vector<1x16x32xbf16>,
    %96 = vector.shape_cast %90 : vector<16x32xf32> to vector<1x16x32xf32>
    %c0_37 = arith.constant 0 : index
    %c8_38 = arith.constant 8 : index
    %c0_39 = arith.constant 0 : index
    %97 = vector.load %arg13[%c0_37, %c8_38, %c0_39] : memref<1x24x32xf32, #tpu.memory_space<vmem>>, vector<1x16x32xf32>
    tpu.vector_store %arg13[%c0_37, %c8_38, %c0_39], %96 {strides = array<i32>} : memref<1x24x32xf32, #tpu.memory_space<vmem>>, vector<1x16x32xf32>,
    %c0_i32_40 = arith.constant 0 : i32
    %c0_41 = arith.constant 0 : index
    %c7 = arith.constant 7 : index
    %c0_42 = arith.constant 0 : index
    %98 = vector.load %arg12[%c0_41, %c7, %c0_42] : memref<1x24x32xbf16, #tpu.memory_space<vmem>>, vector<1x16x32xbf16>
    %99 = vector.shape_cast %98 : vector<1x16x32xbf16> to vector<16x32xbf16>
    %cst_43 = arith.constant dense<0.000000e+00> : vector<16x128xf32>
    %100 = tpu.matmul %99, %6, %cst_43 {dimension_numbers = #tpu.dot_dimension_numbers<[1], [0], [0], [1], [0, 0, 1, 1], [], []>} : vector<16x32xbf16>, vector<32x128xbf16>, vector<16x128xf32> -> vector<16x128xf32>
    %c0_44 = arith.constant 0 : index
    %c8_45 = arith.constant 8 : index
    %c0_46 = arith.constant 0 : index
    %101 = vector.load %arg12[%c0_44, %c8_45, %c0_46] : memref<1x24x32xbf16, #tpu.memory_space<vmem>>, vector<1x16x32xbf16>
    %102 = vector.shape_cast %101 : vector<1x16x32xbf16> to vector<16x32xbf16>
    %cst_47 = arith.constant dense<0.000000e+00> : vector<16x128xf32>
    %103 = tpu.matmul %102, %8, %cst_47 {dimension_numbers = #tpu.dot_dimension_numbers<[1], [0], [0], [1], [0, 0, 1, 1], [], []>} : vector<16x32xbf16>, vector<32x128xbf16>, vector<16x128xf32> -> vector<16x128xf32>
    %104 = arith.addf %100, %103 : vector<16x128xf32>
    %105 = arith.extf %28 : vector<16x128xbf16> to vector<16x128xf32>
    %106 = arith.addf %104, %105 : vector<16x128xf32>
    %107 = vector.broadcast %17 : vector<1x128xf32> to vector<16x128xf32>
    %108 = arith.mulf %106, %107 : vector<16x128xf32>
    %109 = math.tanh %108 : vector<16x128xf32>
    %110 = vector.broadcast %17 : vector<1x128xf32> to vector<16x128xf32>
    %111 = arith.mulf %109, %110 : vector<16x128xf32>
    %112 = vector.broadcast %20 : vector<1x128xf32> to vector<16x128xf32>
    %113 = arith.addf %111, %112 : vector<16x128xf32>
    %114 = vector.extract_strided_slice %113 {offsets = [0, 0], sizes = [16, 32], strides = [1, 1]} : vector<16x128xf32> to vector<16x32xf32>
    %115 = vector.extract_strided_slice %113 {offsets = [0, 32], sizes = [16, 32], strides = [1, 1]} : vector<16x128xf32> to vector<16x32xf32>
    %116 = vector.extract_strided_slice %113 {offsets = [0, 64], sizes = [16, 32], strides = [1, 1]} : vector<16x128xf32> to vector<16x32xf32>
    %117 = vector.extract_strided_slice %113 {offsets = [0, 96], sizes = [16, 32], strides = [1, 1]} : vector<16x128xf32> to vector<16x32xf32>
    %c0_48 = arith.constant 0 : index
    %c7_49 = arith.constant 7 : index
    %c0_50 = arith.constant 0 : index
    %118 = vector.load %arg13[%c0_48, %c7_49, %c0_50] : memref<1x24x32xf32, #tpu.memory_space<vmem>>, vector<1x16x32xf32>
    %119 = vector.shape_cast %118 : vector<1x16x32xf32> to vector<16x32xf32>
    %120 = arith.mulf %117, %119 : vector<16x32xf32>
    %121 = arith.mulf %114, %116 : vector<16x32xf32>
    %122 = arith.addf %120, %121 : vector<16x32xf32>
    %123 = math.tanh %122 : vector<16x32xf32>
    %124 = arith.mulf %115, %123 : vector<16x32xf32>
    %125 = arith.truncf %124 : vector<16x32xf32> to vector<16x32xbf16>
    %126 = vector.shape_cast %125 : vector<16x32xbf16> to vector<1x16x32xbf16>
    %c0_51 = arith.constant 0 : index
    %c8_52 = arith.constant 8 : index
    %c0_53 = arith.constant 0 : index
    %127 = vector.load %arg12[%c0_51, %c8_52, %c0_53] : memref<1x24x32xbf16, #tpu.memory_space<vmem>>, vector<1x16x32xbf16>
    tpu.vector_store %arg12[%c0_51, %c8_52, %c0_53], %126 {strides = array<i32>} : memref<1x24x32xbf16, #tpu.memory_space<vmem>>, vector<1x16x32xbf16>,
    %128 = vector.shape_cast %122 : vector<16x32xf32> to vector<1x16x32xf32>
    %c0_54 = arith.constant 0 : index
    %c8_55 = arith.constant 8 : index
    %c0_56 = arith.constant 0 : index
    %129 = vector.load %arg13[%c0_54, %c8_55, %c0_56] : memref<1x24x32xf32, #tpu.memory_space<vmem>>, vector<1x16x32xf32>
    tpu.vector_store %arg13[%c0_54, %c8_55, %c0_56], %128 {strides = array<i32>} : memref<1x24x32xf32, #tpu.memory_space<vmem>>, vector<1x16x32xf32>,
    %c1_i32_57 = arith.constant 1 : i32
    %c0_58 = arith.constant 0 : index
    %c7_59 = arith.constant 7 : index
    %c0_60 = arith.constant 0 : index
    %130 = vector.load %arg12[%c0_58, %c7_59, %c0_60] : memref<1x24x32xbf16, #tpu.memory_space<vmem>>, vector<1x16x32xbf16>
    %131 = vector.shape_cast %130 : vector<1x16x32xbf16> to vector<16x32xbf16>
    %cst_61 = arith.constant dense<0.000000e+00> : vector<16x128xf32>
    %132 = tpu.matmul %131, %6, %cst_61 {dimension_numbers = #tpu.dot_dimension_numbers<[1], [0], [0], [1], [0, 0, 1, 1], [], []>} : vector<16x32xbf16>, vector<32x128xbf16>, vector<16x128xf32> -> vector<16x128xf32>
    %c0_62 = arith.constant 0 : index
    %c8_63 = arith.constant 8 : index
    %c0_64 = arith.constant 0 : index
    %133 = vector.load %arg12[%c0_62, %c8_63, %c0_64] : memref<1x24x32xbf16, #tpu.memory_space<vmem>>, vector<1x16x32xbf16>
    %134 = vector.shape_cast %133 : vector<1x16x32xbf16> to vector<16x32xbf16>
    %cst_65 = arith.constant dense<0.000000e+00> : vector<16x128xf32>
    %135 = tpu.matmul %134, %8, %cst_65 {dimension_numbers = #tpu.dot_dimension_numbers<[1], [0], [0], [1], [0, 0, 1, 1], [], []>} : vector<16x32xbf16>, vector<32x128xbf16>, vector<16x128xf32> -> vector<16x128xf32>
    %136 = arith.addf %132, %135 : vector<16x128xf32>
    %137 = arith.extf %28 : vector<16x128xbf16> to vector<16x128xf32>
    %138 = arith.addf %136, %137 : vector<16x128xf32>
    %139 = vector.broadcast %17 : vector<1x128xf32> to vector<16x128xf32>
    %140 = arith.mulf %138, %139 : vector<16x128xf32>
    %141 = math.tanh %140 : vector<16x128xf32>
    %142 = vector.broadcast %17 : vector<1x128xf32> to vector<16x128xf32>
    %143 = arith.mulf %141, %142 : vector<16x128xf32>
    %144 = vector.broadcast %20 : vector<1x128xf32> to vector<16x128xf32>
    %145 = arith.addf %143, %144 : vector<16x128xf32>
    %146 = vector.extract_strided_slice %145 {offsets = [0, 0], sizes = [16, 32], strides = [1, 1]} : vector<16x128xf32> to vector<16x32xf32>
    %147 = vector.extract_strided_slice %145 {offsets = [0, 32], sizes = [16, 32], strides = [1, 1]} : vector<16x128xf32> to vector<16x32xf32>
    %148 = vector.extract_strided_slice %145 {offsets = [0, 64], sizes = [16, 32], strides = [1, 1]} : vector<16x128xf32> to vector<16x32xf32>
    %149 = vector.extract_strided_slice %145 {offsets = [0, 96], sizes = [16, 32], strides = [1, 1]} : vector<16x128xf32> to vector<16x32xf32>
    %c0_66 = arith.constant 0 : index
    %c7_67 = arith.constant 7 : index
    %c0_68 = arith.constant 0 : index
    %150 = vector.load %arg13[%c0_66, %c7_67, %c0_68] : memref<1x24x32xf32, #tpu.memory_space<vmem>>, vector<1x16x32xf32>
    %151 = vector.shape_cast %150 : vector<1x16x32xf32> to vector<16x32xf32>
    %152 = arith.mulf %149, %151 : vector<16x32xf32>
    %153 = arith.mulf %146, %148 : vector<16x32xf32>
    %154 = arith.addf %152, %153 : vector<16x32xf32>
    %155 = math.tanh %154 : vector<16x32xf32>
    %156 = arith.mulf %147, %155 : vector<16x32xf32>
    %157 = arith.truncf %156 : vector<16x32xf32> to vector<16x32xbf16>
    %158 = vector.shape_cast %157 : vector<16x32xbf16> to vector<1x16x32xbf16>
    %c0_69 = arith.constant 0 : index
    %c8_70 = arith.constant 8 : index
    %c0_71 = arith.constant 0 : index
    %159 = vector.load %arg12[%c0_69, %c8_70, %c0_71] : memref<1x24x32xbf16, #tpu.memory_space<vmem>>, vector<1x16x32xbf16>
    tpu.vector_store %arg12[%c0_69, %c8_70, %c0_71], %158 {strides = array<i32>} : memref<1x24x32xbf16, #tpu.memory_space<vmem>>, vector<1x16x32xbf16>,
    %160 = vector.shape_cast %154 : vector<16x32xf32> to vector<1x16x32xf32>
    %c0_72 = arith.constant 0 : index
    %c8_73 = arith.constant 8 : index
    %c0_74 = arith.constant 0 : index
    %161 = vector.load %arg13[%c0_72, %c8_73, %c0_74] : memref<1x24x32xf32, #tpu.memory_space<vmem>>, vector<1x16x32xf32>
    tpu.vector_store %arg13[%c0_72, %c8_73, %c0_74], %160 {strides = array<i32>} : memref<1x24x32xf32, #tpu.memory_space<vmem>>, vector<1x16x32xf32>,
    %c2_i32 = arith.constant 2 : i32
    %c0_75 = arith.constant 0 : index
    %c7_76 = arith.constant 7 : index
    %c0_77 = arith.constant 0 : index
    %162 = vector.load %arg12[%c0_75, %c7_76, %c0_77] : memref<1x24x32xbf16, #tpu.memory_space<vmem>>, vector<1x16x32xbf16>
    %163 = vector.shape_cast %162 : vector<1x16x32xbf16> to vector<16x32xbf16>
    %cst_78 = arith.constant dense<0.000000e+00> : vector<16x128xf32>
    %164 = tpu.matmul %163, %6, %cst_78 {dimension_numbers = #tpu.dot_dimension_numbers<[1], [0], [0], [1], [0, 0, 1, 1], [], []>} : vector<16x32xbf16>, vector<32x128xbf16>, vector<16x128xf32> -> vector<16x128xf32>
    %c0_79 = arith.constant 0 : index
    %c8_80 = arith.constant 8 : index
    %c0_81 = arith.constant 0 : index
    %165 = vector.load %arg12[%c0_79, %c8_80, %c0_81] : memref<1x24x32xbf16, #tpu.memory_space<vmem>>, vector<1x16x32xbf16>
    %166 = vector.shape_cast %165 : vector<1x16x32xbf16> to vector<16x32xbf16>
    %cst_82 = arith.constant dense<0.000000e+00> : vector<16x128xf32>
    %167 = tpu.matmul %166, %8, %cst_82 {dimension_numbers = #tpu.dot_dimension_numbers<[1], [0], [0], [1], [0, 0, 1, 1], [], []>} : vector<16x32xbf16>, vector<32x128xbf16>, vector<16x128xf32> -> vector<16x128xf32>
    %168 = arith.addf %164, %167 : vector<16x128xf32>
    %169 = arith.extf %28 : vector<16x128xbf16> to vector<16x128xf32>
    %170 = arith.addf %168, %169 : vector<16x128xf32>
    %171 = vector.broadcast %17 : vector<1x128xf32> to vector<16x128xf32>
    %172 = arith.mulf %170, %171 : vector<16x128xf32>
    %173 = math.tanh %172 : vector<16x128xf32>
    %174 = vector.broadcast %17 : vector<1x128xf32> to vector<16x128xf32>
    %175 = arith.mulf %173, %174 : vector<16x128xf32>
    %176 = vector.broadcast %20 : vector<1x128xf32> to vector<16x128xf32>
    %177 = arith.addf %175, %176 : vector<16x128xf32>
    %178 = vector.extract_strided_slice %177 {offsets = [0, 0], sizes = [16, 32], strides = [1, 1]} : vector<16x128xf32> to vector<16x32xf32>
    %179 = vector.extract_strided_slice %177 {offsets = [0, 32], sizes = [16, 32], strides = [1, 1]} : vector<16x128xf32> to vector<16x32xf32>
    %180 = vector.extract_strided_slice %177 {offsets = [0, 64], sizes = [16, 32], strides = [1, 1]} : vector<16x128xf32> to vector<16x32xf32>
    %181 = vector.extract_strided_slice %177 {offsets = [0, 96], sizes = [16, 32], strides = [1, 1]} : vector<16x128xf32> to vector<16x32xf32>
    %c0_83 = arith.constant 0 : index
    %c7_84 = arith.constant 7 : index
    %c0_85 = arith.constant 0 : index
    %182 = vector.load %arg13[%c0_83, %c7_84, %c0_85] : memref<1x24x32xf32, #tpu.memory_space<vmem>>, vector<1x16x32xf32>
    %183 = vector.shape_cast %182 : vector<1x16x32xf32> to vector<16x32xf32>
    %184 = arith.mulf %181, %183 : vector<16x32xf32>
    %185 = arith.mulf %178, %180 : vector<16x32xf32>
    %186 = arith.addf %184, %185 : vector<16x32xf32>
    %187 = math.tanh %186 : vector<16x32xf32>
    %188 = arith.mulf %179, %187 : vector<16x32xf32>
    %189 = arith.truncf %188 : vector<16x32xf32> to vector<16x32xbf16>
    %190 = vector.shape_cast %189 : vector<16x32xbf16> to vector<1x16x32xbf16>
    %c0_86 = arith.constant 0 : index
    %c8_87 = arith.constant 8 : index
    %c0_88 = arith.constant 0 : index
    %191 = vector.load %arg12[%c0_86, %c8_87, %c0_88] : memref<1x24x32xbf16, #tpu.memory_space<vmem>>, vector<1x16x32xbf16>
    tpu.vector_store %arg12[%c0_86, %c8_87, %c0_88], %190 {strides = array<i32>} : memref<1x24x32xbf16, #tpu.memory_space<vmem>>, vector<1x16x32xbf16>,
    %192 = vector.shape_cast %186 : vector<16x32xf32> to vector<1x16x32xf32>
    %c0_89 = arith.constant 0 : index
    %c8_90 = arith.constant 8 : index
    %c0_91 = arith.constant 0 : index
    %193 = vector.load %arg13[%c0_89, %c8_90, %c0_91] : memref<1x24x32xf32, #tpu.memory_space<vmem>>, vector<1x16x32xf32>
    tpu.vector_store %arg13[%c0_89, %c8_90, %c0_91], %192 {strides = array<i32>} : memref<1x24x32xf32, #tpu.memory_space<vmem>>, vector<1x16x32xf32>,
    %c0_92 = arith.constant 0 : index
    %c23 = arith.constant 23 : index
    %c0_93 = arith.constant 0 : index
    %194 = vector.load %arg12[%c0_92, %c23, %c0_93] : memref<1x24x32xbf16, #tpu.memory_space<vmem>>, vector<1x1x32xbf16>
    %195 = vector.shape_cast %194 : vector<1x1x32xbf16> to vector<1x32xbf16>
    %196 = arith.extf %195 : vector<1x32xbf16> to vector<1x32xf32>
    %c0_94 = arith.constant 0 : index
    %c23_95 = arith.constant 23 : index
    %c0_96 = arith.constant 0 : index
    %197 = vector.load %arg13[%c0_94, %c23_95, %c0_96] : memref<1x24x32xf32, #tpu.memory_space<vmem>>, vector<1x1x32xf32>
    %198 = vector.shape_cast %197 : vector<1x1x32xf32> to vector<1x32xf32>
    %c0_97 = arith.constant 0 : index
    %c0_98 = arith.constant 0 : index
    %c0_99 = arith.constant 0 : index
    %199 = vector.load %arg10[%c0_97, %c0_98, %c0_99] : memref<1x1x32xf32, #tpu.memory_space<vmem>>, vector<1x1x32xf32>
    %200 = vector.shape_cast %199 : vector<1x1x32xf32> to vector<1x32xf32>
    %201 = vector.shape_cast %196 : vector<1x32xf32> to vector<1x1x32xf32>
    tpu.vector_store %arg10[%c0_97, %c0_98, %c0_99], %201 {strides = array<i32>} : memref<1x1x32xf32, #tpu.memory_space<vmem>>, vector<1x1x32xf32>,
    %c0_100 = arith.constant 0 : index
    %c0_101 = arith.constant 0 : index
    %c0_102 = arith.constant 0 : index
    %202 = vector.load %arg11[%c0_100, %c0_101, %c0_102] : memref<1x1x32xf32, #tpu.memory_space<vmem>>, vector<1x1x32xf32>
    %203 = vector.shape_cast %202 : vector<1x1x32xf32> to vector<1x32xf32>
    %204 = vector.shape_cast %198 : vector<1x32xf32> to vector<1x1x32xf32>
    tpu.vector_store %arg11[%c0_100, %c0_101, %c0_102], %204 {strides = array<i32>} : memref<1x1x32xf32, #tpu.memory_space<vmem>>, vector<1x1x32xf32>,
    %205 = vector.extract_strided_slice %196 {offsets = [0, 16], sizes = [1, 16], strides = [1, 1]} : vector<1x32xf32> to vector<1x16xf32>
    %c0_103 = arith.constant 0 : index
    %c0_104 = arith.constant 0 : index
    %206 = vector.load %arg7[%c0_103, %c0_104] : memref<16x16xf32, #tpu.memory_space<vmem>>, vector<16x16xf32>
    %cst_105 = arith.constant dense<0.000000e+00> : vector<1x16xf32>
    %207 = tpu.matmul %205, %206, %cst_105 {dimension_numbers = #tpu.dot_dimension_numbers<[1], [0], [0], [1], [0, 0, 1, 1], [], []>} : vector<1x16xf32>, vector<16x16xf32>, vector<1x16xf32> -> vector<1x16xf32>
    %c0_106 = arith.constant 0 : index
    %c0_107 = arith.constant 0 : index
    %208 = vector.load %arg8[%c0_106, %c0_107] : memref<1x16xf32, #tpu.memory_space<vmem>>, vector<1x16xf32>
    %209 = arith.addf %207, %208 : vector<1x16xf32>
    %cst_108 = arith.constant dense<0xFF800000> : vector<1xf32>
    %210 = vector.multi_reduction <maximumf>, %209, %cst_108 [1] : vector<1x16xf32> to vector<1xf32>
    %211 = vector.shape_cast %210 : vector<1xf32> to vector<1x1xf32>
    %212 = vector.broadcast %211 : vector<1x1xf32> to vector<1x16xf32>
    %213 = arith.subf %209, %212 : vector<1x16xf32>
    %214 = math.exp %213 : vector<1x16xf32>
    %cst_109 = arith.constant dense<0.000000e+00> : vector<1xf32>
    %215 = vector.multi_reduction <add>, %214, %cst_109 [1] : vector<1x16xf32> to vector<1xf32>
    %216 = vector.shape_cast %215 : vector<1xf32> to vector<1x1xf32>
    %217 = math.log %216 : vector<1x1xf32>
    %218 = vector.broadcast %217 : vector<1x1xf32> to vector<1x16xf32>
    %219 = arith.subf %213, %218 : vector<1x16xf32>
    %c0_110 = arith.constant 0 : index
    %c0_111 = arith.constant 0 : index
    %c0_112 = arith.constant 0 : index
    %220 = vector.load %arg9[%c0_110, %c0_111, %c0_112] : memref<1x1x16xf32, #tpu.memory_space<vmem>>, vector<1x1x16xf32>
    %221 = vector.shape_cast %220 : vector<1x1x16xf32> to vector<1x16xf32>
    %222 = vector.shape_cast %219 : vector<1x16xf32> to vector<1x1x16xf32>
    tpu.vector_store %arg9[%c0_110, %c0_111, %c0_112], %222 {strides = array<i32>} : memref<1x1x16xf32, #tpu.memory_space<vmem>>, vector<1x1x16xf32>,
    return
  }
  func.func @transform_0(%arg0: i32) -> (i32, i32, i32) {
    %c0_i32 = arith.constant 0 : i32
    %c0_i32_0 = arith.constant 0 : i32
    %c0_i32_1 = arith.constant 0 : i32
    return %arg0, %c0_i32, %c0_i32_0 : i32, i32, i32
  }
  func.func @transform_1(%arg0: i32) -> (i32, i32, i32) {
    %c0_i32 = arith.constant 0 : i32
    %c0_i32_0 = arith.constant 0 : i32
    %c0_i32_1 = arith.constant 0 : i32
    return %arg0, %c0_i32, %c0_i32_0 : i32, i32, i32
  }
  func.func @transform_2(%arg0: i32) -> (i32, i32, i32) {
    %c0_i32 = arith.constant 0 : i32
    %c0_i32_0 = arith.constant 0 : i32
    %c0_i32_1 = arith.constant 0 : i32
    return %arg0, %c0_i32, %c0_i32_0 : i32, i32, i32
  }
  func.func @transform_3(%arg0: i32) -> (i32, i32) {
    %c0_i32 = arith.constant 0 : i32
    %c0_i32_0 = arith.constant 0 : i32
    %c0_i32_1 = arith.constant 0 : i32
    return %c0_i32, %c0_i32_0 : i32, i32
  }
  func.func @transform_4(%arg0: i32) -> (i32, i32, i32) {
    %c0_i32 = arith.constant 0 : i32
    %c0_i32_0 = arith.constant 0 : i32
    %c0_i32_1 = arith.constant 0 : i32
    %c0_i32_2 = arith.constant 0 : i32
    return %c0_i32, %c0_i32_0, %c0_i32_1 : i32, i32, i32
  }
  func.func @transform_5(%arg0: i32) -> (i32, i32) {
    %c0_i32 = arith.constant 0 : i32
    %c0_i32_0 = arith.constant 0 : i32
    %c0_i32_1 = arith.constant 0 : i32
    return %c0_i32, %c0_i32_0 : i32, i32
  }
  func.func @transform_6(%arg0: i32) -> (i32, i32) {
    %c0_i32 = arith.constant 0 : i32
    %c0_i32_0 = arith.constant 0 : i32
    %c0_i32_1 = arith.constant 0 : i32
    return %c0_i32, %c0_i32_0 : i32, i32
  }
  func.func @transform_7(%arg0: i32) -> (i32, i32) {
    %c0_i32 = arith.constant 0 : i32
    %c0_i32_0 = arith.constant 0 : i32
    %c0_i32_1 = arith.constant 0 : i32
    return %c0_i32, %c0_i32_0 : i32, i32
  }
  func.func @transform_8(%arg0: i32) -> (i32, i32, i32) {
    %c0_i32 = arith.constant 0 : i32
    %c0_i32_0 = arith.constant 0 : i32
    %c0_i32_1 = arith.constant 0 : i32
    return %arg0, %c0_i32, %c0_i32_0 : i32, i32, i32
  }
  func.func @transform_9(%arg0: i32) -> (i32, i32, i32) {
    %c0_i32 = arith.constant 0 : i32
    %c0_i32_0 = arith.constant 0 : i32
    %c0_i32_1 = arith.constant 0 : i32
    return %arg0, %c0_i32, %c0_i32_0 : i32, i32, i32
  }
  func.func @transform_10(%arg0: i32) -> (i32, i32, i32) {
    %c0_i32 = arith.constant 0 : i32
    %c0_i32_0 = arith.constant 0 : i32
    %c0_i32_1 = arith.constant 0 : i32
    return %arg0, %c0_i32, %c0_i32_0 : i32, i32, i32
  }
}

</mosaic_0001>

<llo_original>
// kernel: tpu_custom_call.1
$region0: #{tpu_custom_call.1}
  #allocation0 [shape = 'u32[]', space=smem, size = 0x4, offset = 0x4, fixed_abs, tag = 'smem constant byte address 0x4 - core index']
  #allocation1 [shape = 'u32[72,128]{1,0:T(1,128)}', space=vmem, size = 0x9000, scoped, tag = 'internal scratch']
  #allocation2 [shape = 'bf16[1,24,32]{2,1,0:T(8,128)(2,1)}', space=vmem, size = 0x1800, scoped, tag = 'scratch operand']
  #allocation3 [shape = 'f32[1,24,32]{2,1,0:T(8,128)}', space=vmem, size = 0x3000, scoped, tag = 'scratch operand']
  %s0 = inlined_call_operand.vmem [shape: bf16[2,16,6], index: 0, kind: input, shape index: {}]
  %s1 = inlined_call_operand.vmem [shape: f32[2,1,32], index: 1, kind: input, shape index: {}]
  %s2 = inlined_call_operand.vmem [shape: f32[2,1,32], index: 2, kind: input, shape index: {}]
  %s3 = inlined_call_operand.vmem [shape: bf16[6,128], index: 3, kind: input, shape index: {}]
  %s4 = inlined_call_operand.hbm [shape: bf16[2,32,128], index: 4, kind: input, shape index: {}]
  %s5 = inlined_call_operand.vmem [shape: f32[1,128], index: 5, kind: input, shape index: {}]
  %s6 = inlined_call_operand.vmem [shape: f32[16,16], index: 6, kind: input, shape index: {}]
  %s7 = inlined_call_operand.vmem [shape: f32[1,16], index: 7, kind: input, shape index: {}]
  %s8 = inlined_call_operand.hbm [shape: f32[2,1,16], index: 8, kind: output, shape index: {0}]
  %s9 = inlined_call_operand.hbm [shape: f32[2,1,32], index: 9, kind: output, shape index: {1}]
  %s10 = inlined_call_operand.hbm [shape: f32[2,1,32], index: 10, kind: output, shape index: {2}]
  %11 = xla_tuple %s8, %s9, %s10
  %s12 = sld [smem:[#allocation0]]
  $region85: #{tpu_custom_call.1} parent=0
    _
  %s14 = ssub.s32 1, %s12
  %s15 = scalar_select 0, %s14, %s12
  $region1: #{tpu_custom_call.1} parent=0
    #allocation4 [shape = 'u8[16384]{0}', space=vmem, size = 0x4000, scoped, tag = 'input window, operand 4, single buffered']
    #allocation5 [shape = 's32[2]{0}', space=sflag, size = 0x8, scoped, tag = 'scoped memory for tpu_custom_call.1']
    #allocation6 [shape = 's32[2]{0}', space=sflag, size = 0x8, scoped, tag = 'scoped memory for tpu_custom_call.1']
    #allocation7 [shape = 'u8[1024]{0}', space=vmem, size = 0x400, scoped, tag = 'output window, operand 0']
    #allocation8 [shape = 'u8[1024]{0}', space=vmem, size = 0x400, scoped, tag = 'output window, operand 1']
    #allocation9 [shape = 's32[2]{0}', space=sflag, size = 0x8, scoped, tag = 'scoped memory for tpu_custom_call.1']
    #allocation10 [shape = 'u8[1024]{0}', space=vmem, size = 0x400, scoped, tag = 'output window, operand 2']
    %16 = vsyncpa [#allocation5], 0
    %17 = vsyncpa [#allocation6], 0
    %s18 = scalar_lea.sflag [#allocation6], 1
    %19 = vsyncpa %s18, 0
    %20 = vsyncpa [#allocation9], 0
    %s21 = scalar_lea.sflag [#allocation9], 1
    %22 = vsyncpa %s21, 0
    loop: start=0, step=1, limit=4
    $region2: #{tpu_custom_call.1} parent=1 // loop_pre_header
      _
    $region3: #{tpu_custom_call.1} parent=1 // loop_header
      %s24 = sphi 0, %s28
      %p25 = scmp.ge.s32.totalorder %s24, 4
      %s34 = sphi 0, %s36
      %s37 = sphi 0, %s34
      %s38 = sphi 0, %s37
      %s54 = sphi 0, %s38
      %s60 = sphi 0, %s62
      %s63 = sphi 0, %s60
      %s64 = sphi 0, %s63
      %s80 = sphi 0, %s64
      %s86 = sphi 0, %s88
      %s89 = sphi 0, %s86
      %s90 = sphi 0, %s89
      %s106 = sphi 0, %s90
      %s110 = sphi 0, %s110
      %s112 = sphi 0, %s110
      %s113 = sphi 0, %s112
      %s127 = sphi 0, %s113
      %s131 = sphi 0, %s131
      %s133 = sphi 0, %s131
      %s134 = sphi 0, %s133
      %s148 = sphi 0, %s134
      %s152 = sphi 0, %s152
      %s154 = sphi 0, %s152
      %s155 = sphi 0, %s154
      %s169 = sphi 0, %s155
      %s173 = sphi 0, %s173
      %s175 = sphi 0, %s173
      %s176 = sphi 0, %s175
      %s190 = sphi 0, %s176
      %s194 = sphi 0, %s194
      %s196 = sphi 0, %s194
      %s197 = sphi 0, %s196
      %s211 = sphi 0, %s197
      %s217 = sphi 0, %s219
      %s220 = sphi 0, %s217
      %s221 = sphi 0, %s220
      %s237 = sphi 0, %s221
      %s243 = sphi 0, %s245
      %s246 = sphi 0, %s243
      %s247 = sphi 0, %s246
      %s263 = sphi 0, %s247
      %s269 = sphi 0, %s271
      %s272 = sphi 0, %s269
      %s273 = sphi 0, %s272
      %s289 = sphi 0, %s273
    $region4: #{tpu_custom_call.1} parent=1 // loop_header_branch
      %27 = sbr.rel (%p25) target = $region8
    $region5: #{tpu_custom_call.1} parent=1 // loop_body
      %s29 = ssub.s32 %s24, 1
      %s30 = ssub.s32 %s24, 2
      %s31 = sadd.s32 %s24, 1
      %s32 = ssub.s32 %s24, %s31
      %p33 = scmp.eq.s32.totalorder %s32, 0
      %s35 = sadd.s32 %s34, 1
      %s36 = scalar_select %p33, %s34, %s35
      %p39 = pneg %p33
      %p40 = scmp.eq.s32.totalorder %s24, 1
      %p41 = por %p39, %p40
      %p42 = scmp.ne.s32.totalorder %s34, %s37
      %p43 = scmp.eq.s32.totalorder %s24, 0
      %p44 = por %p42, %p43
      %p45 = scmp.ne.s32.totalorder %s34, %s37
      %p46 = scmp.eq.s32.totalorder %s29, 1
      %p47 = por %p45, %p46
      %p48 = scmp.ne.s32.totalorder %s37, %s38
      %p49 = scmp.eq.s32.totalorder %s29, 0
      %p50 = por %p48, %p49
      %p51 = scmp.ne.s32.totalorder %s37, %s38
      %p52 = scmp.eq.s32.totalorder %s30, 1
      %p53 = por %p51, %p52
      %p55 = scmp.ne.s32.totalorder %s38, %s54
      %p56 = scmp.eq.s32.totalorder %s30, 0
      %p57 = por %p55, %p56
      %s58 = ssub.s32 %s24, %s31
      %p59 = scmp.eq.s32.totalorder %s58, 0
      %s61 = sadd.s32 %s60, 1
      %s62 = scalar_select %p59, %s60, %s61
      %p65 = pneg %p59
      %p66 = scmp.eq.s32.totalorder %s24, 1
      %p67 = por %p65, %p66
      %p68 = scmp.ne.s32.totalorder %s60, %s63
      %p69 = scmp.eq.s32.totalorder %s24, 0
      %p70 = por %p68, %p69
      %p71 = scmp.ne.s32.totalorder %s60, %s63
      %p72 = scmp.eq.s32.totalorder %s29, 1
      %p73 = por %p71, %p72
      %p74 = scmp.ne.s32.totalorder %s63, %s64
      %p75 = scmp.eq.s32.totalorder %s29, 0
      %p76 = por %p74, %p75
      %p77 = scmp.ne.s32.totalorder %s63, %s64
      %p78 = scmp.eq.s32.totalorder %s30, 1
      %p79 = por %p77, %p78
      %p81 = scmp.ne.s32.totalorder %s64, %s80
      %p82 = scmp.eq.s32.totalorder %s30, 0
      %p83 = por %p81, %p82
      %s84 = ssub.s32 %s24, %s31
      %p85 = scmp.eq.s32.totalorder %s84, 0
      %s87 = sadd.s32 %s86, 1
      %s88 = scalar_select %p85, %s86, %s87
      %p91 = pneg %p85
      %p92 = scmp.eq.s32.totalorder %s24, 1
      %p93 = por %p91, %p92
      %p94 = scmp.ne.s32.totalorder %s86, %s89
      %p95 = scmp.eq.s32.totalorder %s24, 0
      %p96 = por %p94, %p95
      %p97 = scmp.ne.s32.totalorder %s86, %s89
      %p98 = scmp.eq.s32.totalorder %s29, 1
      %p99 = por %p97, %p98
      %p100 = scmp.ne.s32.totalorder %s89, %s90
      %p101 = scmp.eq.s32.totalorder %s29, 0
      %p102 = por %p100, %p101
      %p103 = scmp.ne.s32.totalorder %s89, %s90
      %p104 = scmp.eq.s32.totalorder %s30, 1
      %p105 = por %p103, %p104
      %p107 = scmp.ne.s32.totalorder %s90, %s106
      %p108 = scmp.eq.s32.totalorder %s30, 0
      %p109 = por %p107, %p108
      %s111 = sadd.s32 %s110, 1
      %p114 = scmp.eq.s32.totalorder %s24, 1
      %p115 = scmp.ne.s32.totalorder %s110, %s112
      %p116 = scmp.eq.s32.totalorder %s24, 0
      %p117 = por %p115, %p116
      %p118 = scmp.ne.s32.totalorder %s110, %s112
      %p119 = scmp.eq.s32.totalorder %s29, 1
      %p120 = por %p118, %p119
      %p121 = scmp.ne.s32.totalorder %s112, %s113
      %p122 = scmp.eq.s32.totalorder %s29, 0
      %p123 = por %p121, %p122
      %p124 = scmp.ne.s32.totalorder %s112, %s113
      %p125 = scmp.eq.s32.totalorder %s30, 1
      %p126 = por %p124, %p125
      %p128 = scmp.ne.s32.totalorder %s113, %s127
      %p129 = scmp.eq.s32.totalorder %s30, 0
      %p130 = por %p128, %p129
      %s132 = sadd.s32 %s131, 1
      %p135 = scmp.eq.s32.totalorder %s24, 1
      %p136 = scmp.ne.s32.totalorder %s131, %s133
      %p137 = scmp.eq.s32.totalorder %s24, 0
      %p138 = por %p136, %p137
      %p139 = scmp.ne.s32.totalorder %s131, %s133
      %p140 = scmp.eq.s32.totalorder %s29, 1
      %p141 = por %p139, %p140
      %p142 = scmp.ne.s32.totalorder %s133, %s134
      %p143 = scmp.eq.s32.totalorder %s29, 0
      %p144 = por %p142, %p143
      %p145 = scmp.ne.s32.totalorder %s133, %s134
      %p146 = scmp.eq.s32.totalorder %s30, 1
      %p147 = por %p145, %p146
      %p149 = scmp.ne.s32.totalorder %s134, %s148
      %p150 = scmp.eq.s32.totalorder %s30, 0
      %p151 = por %p149, %p150
      %s153 = sadd.s32 %s152, 1
      %p156 = scmp.eq.s32.totalorder %s24, 1
      %p157 = scmp.ne.s32.totalorder %s152, %s154
      %p158 = scmp.eq.s32.totalorder %s24, 0
      %p159 = por %p157, %p158
      %p160 = scmp.ne.s32.totalorder %s152, %s154
      %p161 = scmp.eq.s32.totalorder %s29, 1
      %p162 = por %p160, %p161
      %p163 = scmp.ne.s32.totalorder %s154, %s155
      %p164 = scmp.eq.s32.totalorder %s29, 0
      %p165 = por %p163, %p164
      %p166 = scmp.ne.s32.totalorder %s154, %s155
      %p167 = scmp.eq.s32.totalorder %s30, 1
      %p168 = por %p166, %p167
      %p170 = scmp.ne.s32.totalorder %s155, %s169
      %p171 = scmp.eq.s32.totalorder %s30, 0
      %p172 = por %p170, %p171
      %s174 = sadd.s32 %s173, 1
      %p177 = scmp.eq.s32.totalorder %s24, 1
      %p178 = scmp.ne.s32.totalorder %s173, %s175
      %p179 = scmp.eq.s32.totalorder %s24, 0
      %p180 = por %p178, %p179
      %p181 = scmp.ne.s32.totalorder %s173, %s175
      %p182 = scmp.eq.s32.totalorder %s29, 1
      %p183 = por %p181, %p182
      %p184 = scmp.ne.s32.totalorder %s175, %s176
      %p185 = scmp.eq.s32.totalorder %s29, 0
      %p186 = por %p184, %p185
      %p187 = scmp.ne.s32.totalorder %s175, %s176
      %p188 = scmp.eq.s32.totalorder %s30, 1
      %p189 = por %p187, %p188
      %p191 = scmp.ne.s32.totalorder %s176, %s190
      %p192 = scmp.eq.s32.totalorder %s30, 0
      %p193 = por %p191, %p192
      %s195 = sadd.s32 %s194, 1
      %p198 = scmp.eq.s32.totalorder %s24, 1
      %p199 = scmp.ne.s32.totalorder %s194, %s196
      %p200 = scmp.eq.s32.totalorder %s24, 0
      %p201 = por %p199, %p200
      %p202 = scmp.ne.s32.totalorder %s194, %s196
      %p203 = scmp.eq.s32.totalorder %s29, 1
      %p204 = por %p202, %p203
      %p205 = scmp.ne.s32.totalorder %s196, %s197
      %p206 = scmp.eq.s32.totalorder %s29, 0
      %p207 = por %p205, %p206
      %p208 = scmp.ne.s32.totalorder %s196, %s197
      %p209 = scmp.eq.s32.totalorder %s30, 1
      %p210 = por %p208, %p209
      %p212 = scmp.ne.s32.totalorder %s197, %s211
      %p213 = scmp.eq.s32.totalorder %s30, 0
      %p214 = por %p212, %p213
      %s215 = ssub.s32 %s24, %s31
      %p216 = scmp.eq.s32.totalorder %s215, 0
      %s218 = sadd.s32 %s217, 1
      %s219 = scalar_select %p216, %s217, %s218
      %p222 = pneg %p216
      %p223 = scmp.eq.s32.totalorder %s24, 1
      %p224 = por %p222, %p223
      %p225 = scmp.ne.s32.totalorder %s217, %s220
      %p226 = scmp.eq.s32.totalorder %s24, 0
      %p227 = por %p225, %p226
      %p228 = scmp.ne.s32.totalorder %s217, %s220
      %p229 = scmp.eq.s32.totalorder %s29, 1
      %p230 = por %p228, %p229
      %p231 = scmp.ne.s32.totalorder %s220, %s221
      %p232 = scmp.eq.s32.totalorder %s29, 0
      %p233 = por %p231, %p232
      %p234 = scmp.ne.s32.totalorder %s220, %s221
      %p235 = scmp.eq.s32.totalorder %s30, 1
      %p236 = por %p234, %p235
      %p238 = scmp.ne.s32.totalorder %s221, %s237
      %p239 = scmp.eq.s32.totalorder %s30, 0
      %p240 = por %p238, %p239
      %s241 = ssub.s32 %s24, %s31
      %p242 = scmp.eq.s32.totalorder %s241, 0
      %s244 = sadd.s32 %s243, 1
      %s245 = scalar_select %p242, %s243, %s244
      %p248 = pneg %p242
      %p249 = scmp.eq.s32.totalorder %s24, 1
      %p250 = por %p248, %p249
      %p251 = scmp.ne.s32.totalorder %s243, %s246
      %p252 = scmp.eq.s32.totalorder %s24, 0
      %p253 = por %p251, %p252
      %p254 = scmp.ne.s32.totalorder %s243, %s246
      %p255 = scmp.eq.s32.totalorder %s29, 1
      %p256 = por %p254, %p255
      %p257 = scmp.ne.s32.totalorder %s246, %s247
      %p258 = scmp.eq.s32.totalorder %s29, 0
      %p259 = por %p257, %p258
      %p260 = scmp.ne.s32.totalorder %s246, %s247
      %p261 = scmp.eq.s32.totalorder %s30, 1
      %p262 = por %p260, %p261
      %p264 = scmp.ne.s32.totalorder %s247, %s263
      %p265 = scmp.eq.s32.totalorder %s30, 0
      %p266 = por %p264, %p265
      %s267 = ssub.s32 %s24, %s31
      %p268 = scmp.eq.s32.totalorder %s267, 0
      %s270 = sadd.s32 %s269, 1
      %s271 = scalar_select %p268, %s269, %s270
      %p274 = pneg %p268
      %p275 = scmp.eq.s32.totalorder %s24, 1
      %p276 = por %p274, %p275
      %p277 = scmp.ne.s32.totalorder %s269, %s272
      %p278 = scmp.eq.s32.totalorder %s24, 0
      %p279 = por %p277, %p278
      %p280 = scmp.ne.s32.totalorder %s269, %s272
      %p281 = scmp.eq.s32.totalorder %s29, 1
      %p282 = por %p280, %p281
      %p283 = scmp.ne.s32.totalorder %s272, %s273
      %p284 = scmp.eq.s32.totalorder %s29, 0
      %p285 = por %p283, %p284
      %p286 = scmp.ne.s32.totalorder %s272, %s273
      %p287 = scmp.eq.s32.totalorder %s30, 1
      %p288 = por %p286, %p287
      %p290 = scmp.ne.s32.totalorder %s273, %s289
      %p291 = scmp.eq.s32.totalorder %s30, 0
      %p292 = por %p290, %p291
      %p293 = scmp.le.s32.totalorder 1, %s24
      %p294 = scmp.lt.s32.totalorder %s24, 3
      %p295 = pnand %p293, %p294
      %p296 = pneg %p295
      // Predicated region
      $region9: #{tpu_custom_call.1} parent=5 // pred_check
        _
      $region10: #{tpu_custom_call.1} parent=5 // pred_check_branch
        %298 = sbr.rel (%p295) target = $region12
      $region11: #{tpu_custom_call.1} parent=5 // pred_region
        %s299 = ssub.s32 %s24, 1
        // Predicated region
        $region13: #{tpu_custom_call.1} parent=11 // pred_check
          %p300 = pneg %p123
        $region14: #{tpu_custom_call.1} parent=11 // pred_check_branch
          %302 = sbr.rel (%p300) target = $region16
        $region15: #{tpu_custom_call.1} parent=11 // pred_region
          _
        $region16: #{tpu_custom_call.1} parent=11 // pred_fallthru
          _
        // Predicated region
        $region17: #{tpu_custom_call.1} parent=11 // pred_check
          %p303 = pneg %p144
        $region18: #{tpu_custom_call.1} parent=11 // pred_check_branch
          %305 = sbr.rel (%p303) target = $region20
        $region19: #{tpu_custom_call.1} parent=11 // pred_region
          %307 = vsyncadd [#allocation5], 0
          %s308 = sshll.u32 %s4, 4
          %s309 = int_to_ptr.hbm [resolvable:$true] %s308
          %s310 = sshll.u32 [#allocation4], 4
          %s311 = int_to_ptr.vmem [resolvable:$true] %s310
          %316 = dma.hbm_to_vmem [thread:$0]  %s309, 512, %s311, [#allocation5], 64, 64, 4
        $region20: #{tpu_custom_call.1} parent=11 // pred_fallthru
          _
        // Predicated region
        $region21: #{tpu_custom_call.1} parent=11 // pred_check
          %p317 = pneg %p165
        $region22: #{tpu_custom_call.1} parent=11 // pred_check_branch
          %319 = sbr.rel (%p317) target = $region24
        $region23: #{tpu_custom_call.1} parent=11 // pred_region
          _
        $region24: #{tpu_custom_call.1} parent=11 // pred_fallthru
          _
        // Predicated region
        $region25: #{tpu_custom_call.1} parent=11 // pred_check
          %p320 = pneg %p186
        $region26: #{tpu_custom_call.1} parent=11 // pred_check_branch
          %322 = sbr.rel (%p320) target = $region28
        $region27: #{tpu_custom_call.1} parent=11 // pred_region
          _
        $region28: #{tpu_custom_call.1} parent=11 // pred_fallthru
          _
        // Predicated region
        $region29: #{tpu_custom_call.1} parent=11 // pred_check
          %p323 = pneg %p207
        $region30: #{tpu_custom_call.1} parent=11 // pred_check_branch
          %325 = sbr.rel (%p323) target = $region32
        $region31: #{tpu_custom_call.1} parent=11 // pred_region
          _
        $region32: #{tpu_custom_call.1} parent=11 // pred_fallthru
          _
      $region12: #{tpu_custom_call.1} parent=5 // pred_fallthru
        _
      %p326 = scmp.lt.s32.totalorder %s24, 2
      // Predicated region
      $region33: #{tpu_custom_call.1} parent=5 // pred_check
        %p327 = pneg %p326
      $region34: #{tpu_custom_call.1} parent=5 // pred_check_branch
        %329 = sbr.rel (%p327) target = $region36
      $region35: #{tpu_custom_call.1} parent=5 // pred_region
        // Predicated region
        $region37: #{tpu_custom_call.1} parent=35 // pred_check
          %p330 = pneg %p44
        $region38: #{tpu_custom_call.1} parent=35 // pred_check_branch
          %332 = sbr.rel (%p330) target = $region40
        $region39: #{tpu_custom_call.1} parent=35 // pred_region
          %p333 = scmp.lt.s32.totalorder %s24, 1
          %s334 = scalar_select %p333, %s24, 1
          %s335 = smul.addr %s334, 2
          %s336 = smul.addr %s335, 4
          %s337 = scalar_lea.vmem %s0, %s336
        $region40: #{tpu_custom_call.1} parent=35 // pred_fallthru
          _
        // Predicated region
        $region41: #{tpu_custom_call.1} parent=35 // pred_check
          %p338 = pneg %p70
        $region42: #{tpu_custom_call.1} parent=35 // pred_check_branch
          %340 = sbr.rel (%p338) target = $region44
        $region43: #{tpu_custom_call.1} parent=35 // pred_region
          %p341 = scmp.lt.s32.totalorder %s24, 1
          %s342 = scalar_select %p341, %s24, 1
          %s343 = scalar_lea.vmem %s1, %s342
        $region44: #{tpu_custom_call.1} parent=35 // pred_fallthru
          _
        // Predicated region
        $region45: #{tpu_custom_call.1} parent=35 // pred_check
          %p344 = pneg %p96
        $region46: #{tpu_custom_call.1} parent=35 // pred_check_branch
          %346 = sbr.rel (%p344) target = $region48
        $region47: #{tpu_custom_call.1} parent=35 // pred_region
          %p347 = scmp.lt.s32.totalorder %s24, 1
          %s348 = scalar_select %p347, %s24, 1
          %s349 = scalar_lea.vmem %s2, %s348
        $region48: #{tpu_custom_call.1} parent=35 // pred_fallthru
          _
      $region36: #{tpu_custom_call.1} parent=5 // pred_fallthru
        _
      %p350 = scmp.le.s32.totalorder 1, %s24
      %p351 = scmp.lt.s32.totalorder %s24, 3
      %p352 = pnand %p350, %p351
      %p353 = pneg %p352
      // Predicated region
      $region49: #{tpu_custom_call.1} parent=5 // pred_check
        _
      $region50: #{tpu_custom_call.1} parent=5 // pred_check_branch
        %355 = sbr.rel (%p352) target = $region52
      $region51: #{tpu_custom_call.1} parent=5 // pred_region
        %s356 = ssub.s32 %s24, 1
        // Predicated region
        $region53: #{tpu_custom_call.1} parent=51 // pred_check
          %p357 = pneg %p144
        $region54: #{tpu_custom_call.1} parent=51 // pred_check_branch
          %359 = sbr.rel (%p357) target = $region56
        $region55: #{tpu_custom_call.1} parent=51 // pred_region
          %361 = dma.done [#allocation5], 512
        $region56: #{tpu_custom_call.1} parent=51 // pred_fallthru
          _
        %p362 = scmp.lt.s32.totalorder %s29, 1
        %s363 = scalar_select %p362, %s29, 1
        %s364 = smul.addr %s363, 2
        %s365 = smul.addr %s364, 4
        %s366 = scalar_lea.vmem %s0, %s365
        %p367 = pneg %p50
        %p368 = pneg %p47
        %p369 = scmp.lt.s32.totalorder %s29, 1
        %s370 = scalar_select %p369, %s29, 1
        %s371 = scalar_lea.vmem %s1, %s370
        %p372 = pneg %p76
        %p373 = pneg %p73
        %p374 = scmp.lt.s32.totalorder %s29, 1
        %s375 = scalar_select %p374, %s29, 1
        %s376 = scalar_lea.vmem %s2, %s375
        %p377 = pneg %p102
        %p378 = pneg %p99
        %p379 = pneg %p123
        %p380 = pneg %p120
        %p381 = pneg %p144
        %p382 = pneg %p141
        %p383 = pneg %p165
        %p384 = pneg %p162
        %p385 = pneg %p186
        %p386 = pneg %p183
        %p387 = pneg %p207
        %p388 = pneg %p204
        %p389 = pneg %p233
        %p390 = pneg %p230
        %s391 = sand.u32 %s220, 1
        %s392 = scalar_lea.sflag [#allocation6], %s391
        %s393 = sand.u32 %s220, 1
        %s394 = scalar_lea.vmem [#allocation7], %s393
        %p395 = pneg %p259
        %p396 = pneg %p256
        %s397 = sand.u32 %s29, 1
        %s398 = scalar_lea.sflag [#allocation9], %s397
        %s399 = sand.u32 %s246, 1
        %s400 = scalar_lea.vmem [#allocation8], %s399
        %p401 = pneg %p285
        %p402 = pneg %p282
        %s403 = sand.u32 %s29, 1
        %s404 = scalar_lea.sflag [#allocation9], %s403
        %s405 = sand.u32 %s272, 1
        %s406 = scalar_lea.vmem [#allocation10], %s405
        %p407 = scmp.lt.s32.totalorder %s29, 1
        %s408 = scalar_select %p407, %s29, 1
        %s409 = smul.addr %s408, 2
        %s410 = smul.addr %s409, 4
        %s411 = scalar_lea.vmem %s0, %s410
        %p412 = scmp.lt.s32.totalorder %s29, 1
        %s413 = scalar_select %p412, %s29, 1
        %s414 = scalar_lea.vmem %s1, %s413
        %p415 = scmp.lt.s32.totalorder %s29, 1
        %s416 = scalar_select %p415, %s29, 1
        %s417 = scalar_lea.vmem %s2, %s416
        %v419 = vld [vmem:[%s414] sm:$0x1]
        %v420 = vld [vmem:[%s417] sm:$0x1]
        %v421 = vpack.c.bf16 %v419, %v419
        %v422 = vld [vmem:[#allocation4] sm:$0xf]
        %v423 = vld [vmem:[#allocation4 + $0x4] sm:$0xf]
        %v424 = vld [vmem:[#allocation4 + $0x8] sm:$0xf]
        %v425 = vld [vmem:[#allocation4 + $0xc] sm:$0xf]
        %s426 = scalar_lea.vmem [#allocation4], 16
        %v427 = vld [vmem:[%s426] sm:$0xf]
        %v428 = vld [vmem:[%s426 + $0x4] sm:$0xf]
        %v429 = vld [vmem:[%s426 + $0x8] sm:$0xf]
        %v430 = vld [vmem:[%s426 + $0xc] sm:$0xf]
        %v431 = vlaneseq
        %v432 = vand.u32 %v431, 127
        %vm433 = vcmp.ge.s32.totalorder %v432, 64
        %vm434 = vcmp.lt.s32.totalorder %v432, 96
        %vm435 = vmand %vm433, %vm434
        %v436 = vsel %vm435, 1.0, 0.5
        %v437 = vsel %vm435, 0.0, 0.5
        %v438 = vld [vmem:[%s411] sm:$0xf]
        %v439 = vld [vmem:[%s411 + $0x4] sm:$0xf]
        %v440 = vld [vmem:[%s3] sm:$0x7]
        %v441 = vld [vmem:[%s5] sm:$0x1]
        %v443 = vperm.slane %v441, 0
        %v447 = vunpack.c.l.b16 %v438
        %v448 = vunpack.c.l.b16 %v439
        %v449 = vpack.c.b16 %v448, %v447
        %vm450 = vcmask 48128
        %v452 = vsel %vm450, %v449, 0
        %vm454 = vcmask 1042432
        %v456 = vsel %vm454, %v440, 0
        %458 = vmatpush.bf16.msra.mxu0 0
        %459 = vmatpush.bf16.msra.mxu0 0
        %460 = vmatpush.bf16.msra.mxu0 0
        %461 = vmatpush.bf16.msra.mxu0 0
        %462 = vmatpush.bf16.msra.mxu0 0
        %463 = vmatpush.bf16.msra.mxu0 0
        %464 = vmatpush.bf16.msra.mxu0 0
        %465 = vmatpush.bf16.msra.mxu0 %v456
        %466 = vmatmul.bf16.gmra.mxu0 %v452
        %v467 = vpop.f32.mrf.mxu0
        %v468 = vadd.f32 %v443, %v467
        %v469 = vpop.f32.mrf.mxu0
        %v470 = vadd.f32 %v443, %v469
        %471 = vdwg.mxu0
        %v472 = vpack.c.bf16 %v468, %v468
        %v473 = vpack.c.bf16 %v470, %v470
        %v475 = vpack.i.b16 %v421, %v421
        %v477 = vperm.slane %v475, 0
        %vm478 = vcmask 257024
        %479 = vst.msk [vmem:[#allocation2] sm:$0xf] %vm478, %v477
        %v481 = vperm.slane %v420, 0
        %vm483 = vcmask 261120
        %484 = vst.msk [vmem:[#allocation3] sm:$0xff] %vm483, %v481
        %v485 = vlaneseq
        %v486 = vshrl.u32 %v485, 7
        %v487 = vadd.s32 %v486, 8
        %vm488 = vcmp.lt.s32.totalorder %v486, 0
        %v489 = vsub.s32 0, %v486
        %v490 = vsel %vm488, %v489, %v486
        %v491 = vshrl.u32 %v490, 4
        %v492 = vand.u32 %v490, 15
        %v493 = vsub.s32 0, %v492
        %v494 = vsel %vm488, %v493, %v492
        %vm495 = vcmp.lt.s32.totalorder %v487, 0
        %v496 = vsub.s32 0, %v487
        %v497 = vsel %vm495, %v496, %v487
        %v498 = vshrl.u32 %v497, 4
        %v499 = vand.u32 %v497, 15
        %v500 = vsub.s32 0, %v499
        %v501 = vsel %vm495, %v500, %v499
        %vm502 = vcmp.ne.s32.totalorder %v494, 0
        %vm503 = vcmp.ne.s32.totalorder %v501, 0
        %vm504 = vcmp.lt.s32.totalorder %v494, 0
        %vm505 = vcmp.lt.s32.totalorder %v501, 0
        %vm506 = vmand %vm504, %vm502
        %vm507 = vmand %vm505, %vm503
        %v508 = vadd.s32 %v494, 16
        %v509 = vadd.s32 %v501, 16
        %v510 = vsel %vm506, %v508, %v494
        %v511 = vsel %vm507, %v509, %v501
        %v512 = vunpack.c.l.bf16 %v472
        %v513 = vunpack.c.l.bf16 %v473
        %v518 = vunpack.c.l.b16 %v422
        %v519 = vunpack.c.l.b16 %v423
        %v520 = vunpack.c.l.b16 %v424
        %v521 = vunpack.c.l.b16 %v425
        %v522 = vpack.c.b16 %v519, %v518
        %v523 = vpack.c.b16 %v521, %v520
        %v526 = vsel %vm483, %v421, 0
        %528 = vmatpush.bf16.msra.mxu0 0
        %529 = vmatpush.bf16.msra.mxu0 0
        %530 = vmatpush.bf16.msra.mxu0 0
        %531 = vmatpush.bf16.msra.mxu0 0
        %532 = vmatpush.bf16.msra.mxu0 0
        %533 = vmatpush.bf16.msra.mxu0 0
        %534 = vmatpush.bf16.msra.mxu0 %v523
        %535 = vmatpush.bf16.msra.mxu0 %v522
        %536 = vmatmul.bf16.gmra.mxu0 %v526
        %v537 = vpop.f32.mrf.mxu0
        %v538 = vadd.f32 0.0, %v537
        %v539 = vpop.f32.mrf.mxu0
        %540 = vdwg.mxu0
        %v541 = vperm.slane %v538, 0
        %vm542 = vcmp.lt.s32.totalorder %v510, 1
        %vm543 = vcmp.lt.s32.totalorder %v511, 1
        %v544 = vsel %vm542, 1, 0
        %v545 = vsel %vm543, 1, 0
        %vm546 = vcmp.eq.s32.totalorder %v544, 1
        %vm547 = vcmp.eq.s32.totalorder %v545, 1
        %v548 = vsel %vm546, %v541, 0.0
        %v549 = vsel %vm547, %v541, 0.0
        %v550 = vadd.f32 %v512, %v548
        %v551 = vadd.f32 %v513, %v549
        %v552 = vmul.f32 %v550, %v436
        %v553 = vmul.f32 %v551, %v436
        %v554 = vtanh.pop %v552
        %v555 = vtanh.pop %v553
        %v556 = vmul.f32 %v554, %v436
        %v557 = vmul.f32 %v555, %v436
        %v558 = vadd.f32 %v556, %v437
        %v559 = vadd.f32 %v557, %v437
        %v560 = vsel %vm546, %v481, 0.0
        %v561 = vsel %vm547, %v481, 0.0
        %564 = vrot.lane.b32.xlu0 %v560, 96
        %v565 = vpop.permute.xlu0 %564
        %566 = vrot.lane.b32.xlu0 %v561, 96
        %v567 = vpop.permute.xlu0 %566
        %v570 = vmul.f32 %v558, %v565
        %v571 = vmul.f32 %v559, %v567
        %574 = vrot.lane.b32.xlu0 %v558, 64
        %v575 = vpop.permute.xlu0 %574
        %576 = vrot.lane.b32.xlu0 %v559, 64
        %v577 = vpop.permute.xlu0 %576
        %v580 = vmul.f32 %v558, %v575
        %v581 = vmul.f32 %v559, %v577
        %584 = vrot.lane.b32.xlu0 %v580, 96
        %v585 = vpop.permute.xlu0 %584
        %586 = vrot.lane.b32.xlu0 %v581, 96
        %v587 = vpop.permute.xlu0 %586
        %v590 = vadd.f32 %v570, %v585
        %v591 = vadd.f32 %v571, %v587
        %v592 = vtanh.pop %v590
        %v593 = vtanh.pop %v591
        %596 = vrot.lane.b32.xlu0 %v592, 64
        %v597 = vpop.permute.xlu0 %596
        %598 = vrot.lane.b32.xlu0 %v593, 64
        %v599 = vpop.permute.xlu0 %598
        %v602 = vmul.f32 %v558, %v597
        %v603 = vmul.f32 %v559, %v599
        %v604 = vpack.c.bf16 %v602, %v602
        %v605 = vpack.c.bf16 %v603, %v603
        %608 = vrot.lane.b32.xlu0 %v604, 96
        %v609 = vpop.permute.xlu0 %608
        %610 = vrot.lane.b32.xlu0 %v605, 96
        %v611 = vpop.permute.xlu0 %610
        %614 = vst.msk [vmem:[#allocation2 + $0x4] sm:$0xf] %vm478, %v609
        %615 = vst.msk [vmem:[#allocation2 + $0x8] sm:$0xf] %vm478, %v611
        %618 = vrot.lane.b32.xlu0 %v590, 32
        %v619 = vpop.permute.xlu0 %618
        %620 = vrot.lane.b32.xlu0 %v591, 32
        %v621 = vpop.permute.xlu0 %620
        %624 = vst.msk [vmem:[#allocation3 + $0x8] sm:$0xff] %vm483, %v619
        %625 = vst.msk [vmem:[#allocation3 + $0x10] sm:$0xff] %vm483, %v621
        %v626 = vld [vmem:[#allocation2] sm:$0x8]
        %v627 = vld [vmem:[#allocation2 + $0x4] sm:$0xf]
        %v628 = vld [vmem:[#allocation2 + $0x8] sm:$0xf]
        %v631 = vunpack.c.l.b16 %v627
        %v632 = vunpack.c.l.b16 %v628
        %v633 = vpack.c.b16 %v632, %v631
        %v638 = vunpack.c.l.b16 %v427
        %v639 = vunpack.c.l.b16 %v428
        %v640 = vunpack.c.l.b16 %v429
        %v641 = vunpack.c.l.b16 %v430
        %v642 = vpack.c.b16 %v639, %v638
        %v643 = vpack.c.b16 %v641, %v640
        %v647 = vsel %vm483, %v633, 0
        %649 = vmatpush.bf16.msra.mxu0 0
        %650 = vmatpush.bf16.msra.mxu0 0
        %651 = vmatpush.bf16.msra.mxu0 0
        %652 = vmatpush.bf16.msra.mxu0 0
        %653 = vmatpush.bf16.msra.mxu0 0
        %654 = vmatpush.bf16.msra.mxu0 0
        %655 = vmatpush.bf16.msra.mxu0 %v643
        %656 = vmatpush.bf16.msra.mxu0 %v642
        %657 = vmatmul.bf16.gmra.mxu0 %v647
        %v658 = vpop.f32.mrf.mxu0
        %v659 = vadd.f32 0.0, %v658
        %v660 = vpop.f32.mrf.mxu0
        %v661 = vadd.f32 0.0, %v660
        %662 = vdwg.mxu0
        %v664 = vunpack.c.l.b16 %v626
        %v665 = vpack.c.b16 %v631, %v664
        %v666 = vpack.c.b16 %v632, %v632
        %vm667 = vsmask.f32 4352
        %v669 = vshrl.u32 %v665, 16
        %v671 = vrot.slane %v669, 3
        %v672 = vshll.u32 %v665, 16
        %v674 = vrot.slane %v672, 4
        %v675 = vor.u32 %v671, %v674
        %v677 = vshrl.u32 %v666, 16
        %v679 = vrot.slane %v677, 3
        %v680 = vshll.u32 %v666, 16
        %v682 = vrot.slane %v680, 4
        %v683 = vor.u32 %v679, %v682
        %v684 = vsel %vm667, %v675, %v683
        %v686 = vsel %vm483, %v684, 0
        %688 = vmatpush.bf16.msra.mxu0 0
        %689 = vmatpush.bf16.msra.mxu0 0
        %690 = vmatpush.bf16.msra.mxu0 0
        %691 = vmatpush.bf16.msra.mxu0 0
        %692 = vmatpush.bf16.msra.mxu0 0
        %693 = vmatpush.bf16.msra.mxu0 0
        %694 = vmatpush.bf16.msra.mxu0 %v523
        %695 = vmatpush.bf16.msra.mxu0 %v522
        %696 = vmatmul.bf16.gmra.mxu0 %v686
        %v697 = vpop.f32.mrf.mxu0
        %v698 = vadd.f32 %v659, %v697
        %v699 = vpop.f32.mrf.mxu0
        %v700 = vadd.f32 %v661, %v699
        %701 = vdwg.mxu0
        %v702 = vadd.f32 %v698, %v512
        %v703 = vadd.f32 %v700, %v513
        %v704 = vmul.f32 %v702, %v436
        %v705 = vmul.f32 %v703, %v436
        %v706 = vtanh.pop %v704
        %v707 = vtanh.pop %v705
        %v708 = vmul.f32 %v706, %v436
        %v709 = vmul.f32 %v707, %v436
        %v710 = vadd.f32 %v708, %v437
        %v711 = vadd.f32 %v709, %v437
        %v712 = vld [vmem:[#allocation3 + $0x7] sm:$0xff]
        %v713 = vld [vmem:[#allocation3 + $0xf] sm:$0xff]
        %716 = vrot.lane.b32.xlu0 %v712, 96
        %v717 = vpop.permute.xlu0 %716
        %718 = vrot.lane.b32.xlu0 %v713, 96
        %v719 = vpop.permute.xlu0 %718
        %v722 = vmul.f32 %v710, %v717
        %v723 = vmul.f32 %v711, %v719
        %726 = vrot.lane.b32.xlu0 %v710, 64
        %v727 = vpop.permute.xlu0 %726
        %728 = vrot.lane.b32.xlu0 %v711, 64
        %v729 = vpop.permute.xlu0 %728
        %v732 = vmul.f32 %v710, %v727
        %v733 = vmul.f32 %v711, %v729
        %736 = vrot.lane.b32.xlu0 %v732, 96
        %v737 = vpop.permute.xlu0 %736
        %738 = vrot.lane.b32.xlu0 %v733, 96
        %v739 = vpop.permute.xlu0 %738
        %v742 = vadd.f32 %v722, %v737
        %v743 = vadd.f32 %v723, %v739
        %v744 = vtanh.pop %v742
        %v745 = vtanh.pop %v743
        %748 = vrot.lane.b32.xlu0 %v744, 64
        %v749 = vpop.permute.xlu0 %748
        %750 = vrot.lane.b32.xlu0 %v745, 64
        %v751 = vpop.permute.xlu0 %750
        %v754 = vmul.f32 %v710, %v749
        %v755 = vmul.f32 %v711, %v751
        %v756 = vpack.c.bf16 %v754, %v754
        %v757 = vpack.c.bf16 %v755, %v755
        %760 = vrot.lane.b32.xlu0 %v756, 96
        %v761 = vpop.permute.xlu0 %760
        %762 = vrot.lane.b32.xlu0 %v757, 96
        %v763 = vpop.permute.xlu0 %762
        %766 = vst.msk [vmem:[#allocation2 + $0x4] sm:$0xf] %vm478, %v761
        %767 = vst.msk [vmem:[#allocation2 + $0x8] sm:$0xf] %vm478, %v763
        %770 = vrot.lane.b32.xlu0 %v742, 32
        %v771 = vpop.permute.xlu0 %770
        %772 = vrot.lane.b32.xlu0 %v743, 32
        %v773 = vpop.permute.xlu0 %772
        %776 = vst.msk [vmem:[#allocation3 + $0x8] sm:$0xff] %vm483, %v771
        %777 = vst.msk [vmem:[#allocation3 + $0x10] sm:$0xff] %vm483, %v773
        %v778 = vld [vmem:[#allocation2] sm:$0x8]
        %v779 = vld [vmem:[#allocation2 + $0x4] sm:$0xf]
        %v780 = vld [vmem:[#allocation2 + $0x8] sm:$0xf]
        %v783 = vunpack.c.l.b16 %v779
        %v784 = vunpack.c.l.b16 %v780
        %v785 = vpack.c.b16 %v784, %v783
        %v787 = vsel %vm483, %v785, 0
        %789 = vmatpush.bf16.msra.mxu0 0
        %790 = vmatpush.bf16.msra.mxu0 0
        %791 = vmatpush.bf16.msra.mxu0 0
        %792 = vmatpush.bf16.msra.mxu0 0
        %793 = vmatpush.bf16.msra.mxu0 0
        %794 = vmatpush.bf16.msra.mxu0 0
        %795 = vmatpush.bf16.msra.mxu0 %v643
        %796 = vmatpush.bf16.msra.mxu0 %v642
        %797 = vmatmul.bf16.gmra.mxu0 %v787
        %v798 = vpop.f32.mrf.mxu0
        %v799 = vadd.f32 0.0, %v798
        %v800 = vpop.f32.mrf.mxu0
        %v801 = vadd.f32 0.0, %v800
        %802 = vdwg.mxu0
        %v804 = vunpack.c.l.b16 %v778
        %v805 = vpack.c.b16 %v783, %v804
        %v806 = vpack.c.b16 %v784, %v784
        %v808 = vshrl.u32 %v805, 16
        %v810 = vrot.slane %v808, 3
        %v811 = vshll.u32 %v805, 16
        %v813 = vrot.slane %v811, 4
        %v814 = vor.u32 %v810, %v813
        %v816 = vshrl.u32 %v806, 16
        %v818 = vrot.slane %v816, 3
        %v819 = vshll.u32 %v806, 16
        %v821 = vrot.slane %v819, 4
        %v822 = vor.u32 %v818, %v821
        %v823 = vsel %vm667, %v814, %v822
        %v825 = vsel %vm483, %v823, 0
        %827 = vmatpush.bf16.msra.mxu0 0
        %828 = vmatpush.bf16.msra.mxu0 0
        %829 = vmatpush.bf16.msra.mxu0 0
        %830 = vmatpush.bf16.msra.mxu0 0
        %831 = vmatpush.bf16.msra.mxu0 0
        %832 = vmatpush.bf16.msra.mxu0 0
        %833 = vmatpush.bf16.msra.mxu0 %v523
        %834 = vmatpush.bf16.msra.mxu0 %v522
        %835 = vmatmul.bf16.gmra.mxu0 %v825
        %v836 = vpop.f32.mrf.mxu0
        %v837 = vadd.f32 %v799, %v836
        %v838 = vpop.f32.mrf.mxu0
        %v839 = vadd.f32 %v801, %v838
        %840 = vdwg.mxu0
        %v841 = vadd.f32 %v837, %v512
        %v842 = vadd.f32 %v839, %v513
        %v843 = vmul.f32 %v841, %v436
        %v844 = vmul.f32 %v842, %v436
        %v845 = vtanh.pop %v843
        %v846 = vtanh.pop %v844
        %v847 = vmul.f32 %v845, %v436
        %v848 = vmul.f32 %v846, %v436
        %v849 = vadd.f32 %v847, %v437
        %v850 = vadd.f32 %v848, %v437
        %v851 = vld [vmem:[#allocation3 + $0x7] sm:$0xff]
        %v852 = vld [vmem:[#allocation3 + $0xf] sm:$0xff]
        %855 = vrot.lane.b32.xlu0 %v851, 96
        %v856 = vpop.permute.xlu0 %855
        %857 = vrot.lane.b32.xlu0 %v852, 96
        %v858 = vpop.permute.xlu0 %857
        %v861 = vmul.f32 %v849, %v856
        %v862 = vmul.f32 %v850, %v858
        %865 = vrot.lane.b32.xlu0 %v849, 64
        %v866 = vpop.permute.xlu0 %865
        %867 = vrot.lane.b32.xlu0 %v850, 64
        %v868 = vpop.permute.xlu0 %867
        %v871 = vmul.f32 %v849, %v866
        %v872 = vmul.f32 %v850, %v868
        %875 = vrot.lane.b32.xlu0 %v871, 96
        %v876 = vpop.permute.xlu0 %875
        %877 = vrot.lane.b32.xlu0 %v872, 96
        %v878 = vpop.permute.xlu0 %877
        %v881 = vadd.f32 %v861, %v876
        %v882 = vadd.f32 %v862, %v878
        %v883 = vtanh.pop %v881
        %v884 = vtanh.pop %v882
        %887 = vrot.lane.b32.xlu0 %v883, 64
        %v888 = vpop.permute.xlu0 %887
        %889 = vrot.lane.b32.xlu0 %v884, 64
        %v890 = vpop.permute.xlu0 %889
        %v893 = vmul.f32 %v849, %v888
        %v894 = vmul.f32 %v850, %v890
        %v895 = vpack.c.bf16 %v893, %v893
        %v896 = vpack.c.bf16 %v894, %v894
        %899 = vrot.lane.b32.xlu0 %v895, 96
        %v900 = vpop.permute.xlu0 %899
        %901 = vrot.lane.b32.xlu0 %v896, 96
        %v902 = vpop.permute.xlu0 %901
        %905 = vst.msk [vmem:[#allocation2 + $0x4] sm:$0xf] %vm478, %v900
        %906 = vst.msk [vmem:[#allocation2 + $0x8] sm:$0xf] %vm478, %v902
        %909 = vrot.lane.b32.xlu0 %v881, 32
        %v910 = vpop.permute.xlu0 %909
        %911 = vrot.lane.b32.xlu0 %v882, 32
        %v912 = vpop.permute.xlu0 %911
        %915 = vst.msk [vmem:[#allocation3 + $0x8] sm:$0xff] %vm483, %v910
        %916 = vst.msk [vmem:[#allocation3 + $0x10] sm:$0xff] %vm483, %v912
        %v917 = vld [vmem:[#allocation2] sm:$0x8]
        %v918 = vld [vmem:[#allocation2 + $0x4] sm:$0xf]
        %v919 = vld [vmem:[#allocation2 + $0x8] sm:$0xf]
        %v922 = vunpack.c.l.b16 %v918
        %v923 = vunpack.c.l.b16 %v919
        %v924 = vpack.c.b16 %v923, %v922
        %v926 = vsel %vm483, %v924, 0
        %928 = vmatpush.bf16.msra.mxu0 0
        %929 = vmatpush.bf16.msra.mxu0 0
        %930 = vmatpush.bf16.msra.mxu0 0
        %931 = vmatpush.bf16.msra.mxu0 0
        %932 = vmatpush.bf16.msra.mxu0 0
        %933 = vmatpush.bf16.msra.mxu0 0
        %934 = vmatpush.bf16.msra.mxu0 %v643
        %935 = vmatpush.bf16.msra.mxu0 %v642
        %936 = vmatmul.bf16.gmra.mxu0 %v926
        %v937 = vpop.f32.mrf.mxu0
        %v938 = vadd.f32 0.0, %v937
        %v939 = vpop.f32.mrf.mxu0
        %v940 = vadd.f32 0.0, %v939
        %941 = vdwg.mxu0
        %v943 = vunpack.c.l.b16 %v917
        %v944 = vpack.c.b16 %v922, %v943
        %v945 = vpack.c.b16 %v923, %v923
        %v947 = vshrl.u32 %v944, 16
        %v949 = vrot.slane %v947, 3
        %v950 = vshll.u32 %v944, 16
        %v952 = vrot.slane %v950, 4
        %v953 = vor.u32 %v949, %v952
        %v955 = vshrl.u32 %v945, 16
        %v957 = vrot.slane %v955, 3
        %v958 = vshll.u32 %v945, 16
        %v960 = vrot.slane %v958, 4
        %v961 = vor.u32 %v957, %v960
        %v962 = vsel %vm667, %v953, %v961
        %v964 = vsel %vm483, %v962, 0
        %966 = vmatpush.bf16.msra.mxu0 0
        %967 = vmatpush.bf16.msra.mxu0 0
        %968 = vmatpush.bf16.msra.mxu0 0
        %969 = vmatpush.bf16.msra.mxu0 0
        %970 = vmatpush.bf16.msra.mxu0 0
        %971 = vmatpush.bf16.msra.mxu0 0
        %972 = vmatpush.bf16.msra.mxu0 %v523
        %973 = vmatpush.bf16.msra.mxu0 %v522
        %974 = vmatmul.bf16.gmra.mxu0 %v964
        %v975 = vpop.f32.mrf.mxu0
        %v976 = vadd.f32 %v938, %v975
        %v977 = vpop.f32.mrf.mxu0
        %v978 = vadd.f32 %v940, %v977
        %979 = vdwg.mxu0
        %v980 = vadd.f32 %v976, %v512
        %v981 = vadd.f32 %v978, %v513
        %v982 = vmul.f32 %v980, %v436
        %v983 = vmul.f32 %v981, %v436
        %v984 = vtanh.pop %v982
        %v985 = vtanh.pop %v983
        %v986 = vmul.f32 %v984, %v436
        %v987 = vmul.f32 %v985, %v436
        %v988 = vadd.f32 %v986, %v437
        %v989 = vadd.f32 %v987, %v437
        %v990 = vld [vmem:[#allocation3 + $0x7] sm:$0xff]
        %v991 = vld [vmem:[#allocation3 + $0xf] sm:$0xff]
        %994 = vrot.lane.b32.xlu0 %v990, 96
        %v995 = vpop.permute.xlu0 %994
        %996 = vrot.lane.b32.xlu0 %v991, 96
        %v997 = vpop.permute.xlu0 %996
        %v1000 = vmul.f32 %v988, %v995
        %v1001 = vmul.f32 %v989, %v997
        %1004 = vrot.lane.b32.xlu0 %v988, 64
        %v1005 = vpop.permute.xlu0 %1004
        %1006 = vrot.lane.b32.xlu0 %v989, 64
        %v1007 = vpop.permute.xlu0 %1006
        %v1010 = vmul.f32 %v988, %v1005
        %v1011 = vmul.f32 %v989, %v1007
        %1014 = vrot.lane.b32.xlu0 %v1010, 96
        %v1015 = vpop.permute.xlu0 %1014
        %1016 = vrot.lane.b32.xlu0 %v1011, 96
        %v1017 = vpop.permute.xlu0 %1016
        %v1020 = vadd.f32 %v1000, %v1015
        %v1021 = vadd.f32 %v1001, %v1017
        %v1022 = vtanh.pop %v1020
        %v1023 = vtanh.pop %v1021
        %1026 = vrot.lane.b32.xlu0 %v1022, 64
        %v1027 = vpop.permute.xlu0 %1026
        %1028 = vrot.lane.b32.xlu0 %v1023, 64
        %v1029 = vpop.permute.xlu0 %1028
        %v1032 = vmul.f32 %v988, %v1027
        %v1033 = vmul.f32 %v989, %v1029
        %v1034 = vpack.c.bf16 %v1032, %v1032
        %v1035 = vpack.c.bf16 %v1033, %v1033
        %1038 = vrot.lane.b32.xlu0 %v1034, 96
        %v1039 = vpop.permute.xlu0 %1038
        %1040 = vrot.lane.b32.xlu0 %v1035, 96
        %v1041 = vpop.permute.xlu0 %1040
        %1044 = vst.msk [vmem:[#allocation2 + $0x4] sm:$0xf] %vm478, %v1039
        %1045 = vst.msk [vmem:[#allocation2 + $0x8] sm:$0xf] %vm478, %v1041
        %1048 = vrot.lane.b32.xlu0 %v1020, 32
        %v1049 = vpop.permute.xlu0 %1048
        %1050 = vrot.lane.b32.xlu0 %v1021, 32
        %v1051 = vpop.permute.xlu0 %1050
        %1054 = vst.msk [vmem:[#allocation3 + $0x8] sm:$0xff] %vm483, %v1049
        %1055 = vst.msk [vmem:[#allocation3 + $0x10] sm:$0xff] %vm483, %v1051
        %v1056 = vld [vmem:[#allocation2 + $0x8] sm:$0x8]
        %v1057 = vunpack.c.l.bf16 %v1056
        %v1058 = vld [vmem:[#allocation3 + $0x17] sm:$0x1]
        %vm1059 = vcmask 261127
        %1060 = vst.msk [vmem:[%s400 - $0x7] sm:$0x80] %vm1059, %v1057
        %vm1061 = vcmask 253952
        %1062 = vst.msk [vmem:[%s406] sm:$0x1] %vm1061, %v1058
        %v1063 = vld [vmem:[%s6] sm:$0xff]
        %v1064 = vld [vmem:[%s6 + $0x8] sm:$0xff]
        %v1065 = vld [vmem:[%s7] sm:$0x1]
        %v1067 = vrot.slane %v1057, 7
        %1068 = vrot.lane.b32.xlu0 %v1067, 112
        %v1069 = vpop.permute.xlu0 %1068
        %vm1070 = vcmask 130048
        %v1071 = vsel %vm1070, %v1069, 0
        %1073 = vmatpush.msra.mxu0 0.0
        %1074 = vmatpush.msra.mxu0 0.0
        %1075 = vmatpush.msra.mxu0 0.0
        %1076 = vmatpush.msra.mxu0 0.0
        %1077 = vmatpush.msra.mxu0 0.0
        %1078 = vmatpush.msra.mxu0 0.0
        %1079 = vmatpush.msra.mxu0 0.0
        %1080 = vmatpush.msra.mxu0 0.0
        %1081 = vmatpush.msra.mxu0 0.0
        %1082 = vmatpush.msra.mxu0 0.0
        %1083 = vmatpush.msra.mxu0 0.0
        %1084 = vmatpush.msra.mxu0 0.0
        %1085 = vmatpush.msra.mxu0 0.0
        %1086 = vmatpush.msra.mxu0 0.0
        %1087 = vmatpush.msra.mxu0 %v1064
        %1088 = vmatpush.msra.mxu0 %v1063
        %1089 = vmatmul.f32.gmra.mxu0 %v1071
        %v1090 = vpop.f32.mrf.mxu0
        %v1091 = vadd.f32 %v1065, %v1090
        %1092 = vdwg.mxu0
        %vm1093 = vcmask 122880
        %v1094 = vsel %vm1093, %v1091, -inf
        %1095 = vmax.xlane.f32.xlu0 %v1094
        %v1096 = vpop.xlane.xlu0 %1095
        %v1097 = vsub.f32 %v1091, %v1096
        %v1098 = vmul.f32 %v1097, 1.442695
        %v1099 = vpow.pop %v1098
        %v1100 = vsel %vm1093, %v1099, 0.0
        %1101 = vadd.xlane.f32.xlu0 %v1100
        %v1102 = vpop.xlane.xlu0 %1101
        %v1103 = vlog2.pop %v1102
        %v1104 = vmul.f32 %v1103, 0.6931472
        %v1105 = vsub.f32 %v1097, %v1104
        %1106 = vst.msk [vmem:[%s394] sm:$0x1] %vm1093, %v1105
        %s1107 = sand.u32 %s220, 1
        %s1108 = scalar_lea.sflag [#allocation6], %s1107
        %s1109 = sand.u32 %s220, 1
        %s1110 = scalar_lea.vmem [#allocation7], %s1109
        %s1111 = sand.u32 %s29, 1
        %s1112 = scalar_lea.sflag [#allocation9], %s1111
        %s1113 = sand.u32 %s246, 1
        %s1114 = scalar_lea.vmem [#allocation8], %s1113
        %s1115 = sand.u32 %s29, 1
        %s1116 = scalar_lea.sflag [#allocation9], %s1115
        %s1117 = sand.u32 %s272, 1
        %s1118 = scalar_lea.vmem [#allocation10], %s1117
        // Predicated region
        $region57: #{tpu_custom_call.1} parent=51 // pred_check
          %p1119 = pneg %p230
        $region58: #{tpu_custom_call.1} parent=51 // pred_check_branch
          %1121 = sbr.rel (%p1119) target = $region60
        $region59: #{tpu_custom_call.1} parent=51 // pred_region
          %1123 = vsyncadd %s1108, 0
          %s1124 = scalar_lea.hbm %s8, %s29
          %s1126 = sshll.u32 %s1110, 4
          %s1127 = int_to_ptr.vmem [resolvable:$true] %s1126
          %s1128 = sshll.u32 %s1124, 4
          %s1129 = int_to_ptr.hbm [resolvable:$true] %s1128
          %1131 = dma.vmem_to_hbm [thread:$0]  %s1127, 16, %s1129, %s1108
        $region60: #{tpu_custom_call.1} parent=51 // pred_fallthru
          _
        // Predicated region
        $region61: #{tpu_custom_call.1} parent=51 // pred_check
          %p1132 = pneg %p256
        $region62: #{tpu_custom_call.1} parent=51 // pred_check_branch
          %1134 = sbr.rel (%p1132) target = $region64
        $region63: #{tpu_custom_call.1} parent=51 // pred_region
          %1136 = vsyncadd %s1112, 0
          %s1137 = scalar_lea.hbm %s9, %s29
          %s1139 = sshll.u32 %s1114, 4
          %s1140 = int_to_ptr.vmem [resolvable:$true] %s1139
          %s1141 = sshll.u32 %s1137, 4
          %s1142 = int_to_ptr.hbm [resolvable:$true] %s1141
          %1144 = dma.vmem_to_hbm [thread:$0]  %s1140, 16, %s1142, %s1112
        $region64: #{tpu_custom_call.1} parent=51 // pred_fallthru
          _
        // Predicated region
        $region65: #{tpu_custom_call.1} parent=51 // pred_check
          %p1145 = pneg %p282
        $region66: #{tpu_custom_call.1} parent=51 // pred_check_branch
          %1147 = sbr.rel (%p1145) target = $region68
        $region67: #{tpu_custom_call.1} parent=51 // pred_region
          %1149 = vsyncadd %s1116, 0
          %s1150 = scalar_lea.hbm %s10, %s29
          %s1152 = sshll.u32 %s1118, 4
          %s1153 = int_to_ptr.vmem [resolvable:$true] %s1152
          %s1154 = sshll.u32 %s1150, 4
          %s1155 = int_to_ptr.hbm [resolvable:$true] %s1154
          %1157 = dma.vmem_to_hbm [thread:$0]  %s1153, 16, %s1155, %s1116
        $region68: #{tpu_custom_call.1} parent=51 // pred_fallthru
          _
      $region52: #{tpu_custom_call.1} parent=5 // pred_fallthru
        _
      %p1158 = scmp.le.s32.totalorder 2, %s24
      // Predicated region
      $region69: #{tpu_custom_call.1} parent=5 // pred_check
        %p1159 = pneg %p1158
      $region70: #{tpu_custom_call.1} parent=5 // pred_check_branch
        %1161 = sbr.rel (%p1159) target = $region72
      $region71: #{tpu_custom_call.1} parent=5 // pred_region
        %s1162 = ssub.s32 %s24, 2
        // Predicated region
        $region73: #{tpu_custom_call.1} parent=71 // pred_check
          %p1163 = pneg %p236
        $region74: #{tpu_custom_call.1} parent=71 // pred_check_branch
          %1165 = sbr.rel (%p1163) target = $region76
        $region75: #{tpu_custom_call.1} parent=71 // pred_region
          %s1166 = sand.u32 %s221, 1
          %s1167 = scalar_lea.sflag [#allocation6], %s1166
          %s1168 = sand.u32 %s221, 1
          %s1169 = scalar_lea.vmem [#allocation7], %s1168
          %1171 = dma.done %s1167, 16
        $region76: #{tpu_custom_call.1} parent=71 // pred_fallthru
          _
        // Predicated region
        $region77: #{tpu_custom_call.1} parent=71 // pred_check
          %p1172 = pneg %p262
        $region78: #{tpu_custom_call.1} parent=71 // pred_check_branch
          %1174 = sbr.rel (%p1172) target = $region80
        $region79: #{tpu_custom_call.1} parent=71 // pred_region
          %s1175 = sand.u32 %s30, 1
          %s1176 = scalar_lea.sflag [#allocation9], %s1175
          %s1177 = sand.u32 %s247, 1
          %s1178 = scalar_lea.vmem [#allocation8], %s1177
          %1180 = dma.done %s1176, 16
        $region80: #{tpu_custom_call.1} parent=71 // pred_fallthru
          _
        // Predicated region
        $region81: #{tpu_custom_call.1} parent=71 // pred_check
          %p1181 = pneg %p288
        $region82: #{tpu_custom_call.1} parent=71 // pred_check_branch
          %1183 = sbr.rel (%p1181) target = $region84
        $region83: #{tpu_custom_call.1} parent=71 // pred_region
          %s1184 = sand.u32 %s30, 1
          %s1185 = scalar_lea.sflag [#allocation9], %s1184
          %s1186 = sand.u32 %s273, 1
          %s1187 = scalar_lea.vmem [#allocation10], %s1186
          %1189 = dma.done %s1185, 16
        $region84: #{tpu_custom_call.1} parent=71 // pred_fallthru
          _
      $region72: #{tpu_custom_call.1} parent=5 // pred_fallthru
        _
    $region6: #{tpu_custom_call.1} parent=1 // loop_footer
      %s28 = sadd.s32 1, %s24
    $region7: #{tpu_custom_call.1} parent=1 // loop_footer_branch
      %23 = sbr.rel target = $region3
    $region8: #{tpu_custom_call.1} parent=1 // loop_exit
      _
    %1190 = vsyncpa [#allocation5], 1
    %s1191 = scalar_lea.sflag [#allocation5], 1
    %1192 = vsyncpa %s1191, 1
    %1193 = vsyncpa [#allocation6], 1
    %s1194 = scalar_lea.sflag [#allocation6], 1
    %1195 = vsyncpa %s1194, 1
    %1196 = vsyncpa [#allocation9], 1
    %s1197 = scalar_lea.sflag [#allocation9], 1
    %1198 = vsyncpa %s1197, 1

</llo_original>
